<compile_context>
chip_gen: v7x
topology: tpu7x:2x2x1
jax: 0.10.0
libtpu: 0.0.40
codegen_flags: <defaults>
</compile_context>

<pallas_src>
import numpy as np
import jax
import jax.numpy as jnp
from jax.experimental import pallas as pl
from jax.experimental.pallas import tpu as pltpu

# ------------------------- "config" -------------------------
VOCAB   = 32    # len(config.s2s_target)
EMB     = 16    # embedding_dim
DEC_H   = 32    # decoder_hidden_size (num_layers=1, num_directions=1)
ENC_H   = 32    # encoder_hidden_size * encoder_num_directions
SEQ_LEN = 8     # config.seq_len  -> loop runs SEQ_LEN + 1 steps
ENC_SEQ = 8     # encoder sequence length
BATCH   = 2
SOS_IDX = 1
PAD_IDX = 0
NSTEPS  = SEQ_LEN + 1


# ------------------------- fused Pallas kernel -------------------------
def decoder_fused_kernel(
    tokens_ref,                                    # SMEM (NSTEPS, B) int32 (scalar prefetch)
    h0_ref, emb_ref, enc_ref, energy_t_ref,        # resident VMEM inputs
    w_i_ref, w_h_ref, b_gi_ref, b_gh_ref,
    w_wa_ref, w_fc_ref, b_fc_ref,
    logp_ref, h_out_ref,                           # outputs
    h_scr,                                         # persistent VMEM carry for hidden state
):
    f32 = jnp.float32
    t = pl.program_id(0)

    @pl.when(t == 0)
    def _init():
        h_scr[...] = h0_ref[...]

    # ---- embedding lookup fused in-kernel: one-hot(token) @ emb (MXU) ----
    rows = []
    for b in range(BATCH):
        tok = tokens_ref[t, b]                                         # SMEM scalar read
        lane = jax.lax.broadcasted_iota(jnp.int32, (1, VOCAB), 1)
        rows.append((lane == tok).astype(f32))
    onehot = jnp.concatenate(rows, axis=0)                             # (B, V)
    x = jnp.dot(onehot, emb_ref[...], preferred_element_type=f32)      # (B, E)

    h = h_scr[...]                                                     # (B, H)

    # ---- GRU cell, fused gate matmuls; PyTorch gate order (r, z, n) ----
    gi = jnp.dot(x, w_i_ref[...], preferred_element_type=f32) + b_gi_ref[...]   # (B, 3H)
    gh = jnp.dot(h, w_h_ref[...], preferred_element_type=f32) + b_gh_ref[...]   # (B, 3H)
    r = jax.nn.sigmoid(gi[:, 0 * DEC_H:1 * DEC_H] + gh[:, 0 * DEC_H:1 * DEC_H])
    z = jax.nn.sigmoid(gi[:, 1 * DEC_H:2 * DEC_H] + gh[:, 1 * DEC_H:2 * DEC_H])
    n = jnp.tanh(gi[:, 2 * DEC_H:3 * DEC_H] + r * gh[:, 2 * DEC_H:3 * DEC_H])
    h_new = (1.0 - z) * n + z * h                                      # (B, H)

    # ---- Luong 'general' attention; energy = enc @ W_attn hoisted outside ----
    energy_t = energy_t_ref[...]          # (B, H, T)  (pre-transposed, step-invariant)
    enc = enc_ref[...]                    # (B, T, ENC_H)
    score_rows = [jnp.dot(h_new[b:b + 1, :], energy_t[b], preferred_element_type=f32)
                  for b in range(BATCH)]                               # each (1, T)
    scores = jnp.concatenate(score_rows, axis=0)                       # (B, T)
    m = jnp.max(scores, axis=-1, keepdims=True)
    e = jnp.exp(scores - m)
    attn = e * pl.reciprocal(jnp.sum(e, axis=-1, keepdims=True), approx=True)
    ctx_rows = [jnp.dot(attn[b:b + 1, :], enc[b], preferred_element_type=f32)
                for b in range(BATCH)]                                 # each (1, ENC_H)
    context = jnp.concatenate(ctx_rows, axis=0)                        # (B, ENC_H)

    # ---- tanh(Wa([gru_out, context])) (fused Wa), fc, exact log_softmax ----
    cat = jnp.concatenate([h_new, context], axis=-1)                   # (B, H+ENC_H)
    a = jnp.tanh(jnp.dot(cat, w_wa_ref[...], preferred_element_type=f32))         # (B, H)
    logits = jnp.dot(a, w_fc_ref[...], preferred_element_type=f32) + b_fc_ref[...]  # (B, V)
    mm = jnp.max(logits, axis=-1, keepdims=True)
    lse = jnp.log(jnp.sum(jnp.exp(logits - mm), axis=-1, keepdims=True))
    logp_ref[...] = logits - mm - lse

    h_scr[...] = h_new

    @pl.when(t == pl.num_programs(0) - 1)
    def _final():
        h_out_ref[...] = h_new


def _c2(t, tok):
    return (0, 0)


def _c3(t, tok):
    return (0, 0, 0)


_fused_call = pl.pallas_call(
    decoder_fused_kernel,
    out_shape=(jax.ShapeDtypeStruct((NSTEPS, BATCH, VOCAB), jnp.float32),
               jax.ShapeDtypeStruct((BATCH, DEC_H), jnp.float32)),
    grid_spec=pltpu.PrefetchScalarGridSpec(
        num_scalar_prefetch=1,                    # token ids -> SMEM
        grid=(NSTEPS,),
        in_specs=[
            pl.BlockSpec((BATCH, DEC_H), _c2),                 # h0
            pl.BlockSpec((VOCAB, EMB), _c2),                   # embedding table
            pl.BlockSpec((BATCH, ENC_SEQ, ENC_H), _c3),        # encoder outputs (batch-first)
            pl.BlockSpec((BATCH, DEC_H, ENC_SEQ), _c3),        # hoisted energy, transposed
            pl.BlockSpec((EMB, 3 * DEC_H), _c2),               # packed GRU input weights
            pl.BlockSpec((DEC_H, 3 * DEC_H), _c2),             # packed GRU hidden weights
            pl.BlockSpec((1, 3 * DEC_H), _c2),                 # packed bias (input side, r/z pre-summed)
            pl.BlockSpec((1, 3 * DEC_H), _c2),                 # packed bias (hidden side, only b_hn)
            pl.BlockSpec((DEC_H + ENC_H, DEC_H), _c2),         # packed Wa
            pl.BlockSpec((DEC_H, VOCAB), _c2),                 # fc weight
            pl.BlockSpec((1, VOCAB), _c2),                     # fc bias
        ],
        out_specs=(
            pl.BlockSpec((None, BATCH, VOCAB), lambda t, tok: (t, 0, 0)),  # per-step log-probs
            pl.BlockSpec((BATCH, DEC_H), _c2),                             # final hidden
        ),
        scratch_shapes=[pltpu.VMEM((BATCH, DEC_H), jnp.float32)],
    ),
    compiler_params=pltpu.CompilerParams(dimension_semantics=("arbitrary",)),
)


# ------------------------- plain-JAX glue -------------------------
@jax.jit
def decoder_forward(packed, encoder_hidden, encoder_outputs, target):
    """Mirrors Decoder.forward with deterministic teacher forcing (ratio=1.0).
    Returns outputs [seq_len+1, B, vocab] (log-probs) and final hidden [1, B, H]."""
    h0 = encoder_hidden[0]                                    # (B, H)
    enc_bf = jnp.transpose(encoder_outputs, (1, 0, 2))        # (B, T, ENC_H)
    # Step-invariant attention projection, hoisted out of the timestep loop,
    # pre-transposed to (B, H, T) so the in-kernel score is a per-row matvec.
    energy_t = jnp.einsum("bte,eh->bht", enc_bf, packed["w_attn"])
    # Input token at step t: SOS for t=0, else target[:, t-1] (teacher forcing).
    tokens = jnp.concatenate(
        [jnp.full((target.shape[0], 1), SOS_IDX, dtype=jnp.int32),
         target[:, :SEQ_LEN].astype(jnp.int32)], axis=1)      # (B, SEQ_LEN+1)
    tokens = jnp.transpose(tokens)                            # (SEQ_LEN+1, B)

    logp, h_last = _fused_call(
        tokens, h0, packed["emb"], enc_bf, energy_t,
        packed["w_i"], packed["w_h"], packed["b_gi"], packed["b_gh"],
        packed["w_wa"], packed["w_fc"], packed["b_fc"])
    return logp, h_last[None]


# pure-JAX reference of the whole forward (exact softmax) for correctness check
def ref_forward(emb, raw, encoder_hidden, encoder_outputs, target):
    (w_ir, w_iz, w_in, w_hr, w_hz, w_hn,
     b_ir, b_iz, b_in, b_hr, b_hz, b_hn,
     w_attn, w_wa_h, w_wa_c, w_fc, b_fc) = raw
    h = encoder_hidden[0]
    enc_bf = jnp.transpose(encoder_outputs, (1, 0, 2))
    dec_in = jnp.full((encoder_hidden.shape[1],), SOS_IDX, dtype=jnp.int32)
    outs = []
    for i in range(NSTEPS):
        xe = emb[dec_in]
        r = jax.nn.sigmoid(xe @ w_ir + b_ir + h @ w_hr + b_hr)
        z = jax.nn.sigmoid(xe @ w_iz + b_iz + h @ w_hz + b_hz)
        n = jnp.tanh(xe @ w_in + b_in + r * (h @ w_hn + b_hn))
        h = (1.0 - z) * n + z * h
        energy = jnp.einsum("bte,eh->bth", enc_bf, w_attn)
        scores = jnp.einsum("bth,bh->bt", energy, h)
        attn = jax.nn.softmax(scores, axis=-1)
        context = jnp.einsum("bt,bte->be", attn, enc_bf)
        a = jnp.tanh(h @ w_wa_h + context @ w_wa_c)
        logits = a @ w_fc + b_fc
        outs.append(jax.nn.log_softmax(logits, axis=-1))
        dec_in = target[:, i]
    return jnp.stack(outs, axis=0), h[None]


# ------------------------- parameter init -------------------------
def init_params(key):
    ks = jax.random.split(key, 24)

    def nrm(k, shape, scale=0.1):
        return jax.random.normal(k, shape, jnp.float32) * scale

    emb = nrm(ks[0], (VOCAB, EMB)).at[PAD_IDX].set(0.0)       # padding_idx row zeroed

    # GRU weights pre-transposed to (in, out); gate order r, z, n
    w_ir, w_iz, w_in = (nrm(ks[i], (EMB, DEC_H)) for i in (1, 2, 3))
    w_hr, w_hz, w_hn = (nrm(ks[i], (DEC_H, DEC_H)) for i in (4, 5, 6))
    b_ir, b_iz, b_in = (nrm(ks[i], (1, DEC_H)) for i in (7, 8, 9))
    b_hr, b_hz, b_hn = (nrm(ks[i], (1, DEC_H)) for i in (10, 11, 12))

    w_attn = nrm(ks[13], (ENC_H, DEC_H))                      # Attention 'general' (no bias)
    w_wa_h = nrm(ks[14], (DEC_H, DEC_H))                      # Wa rows for gru output
    w_wa_c = nrm(ks[15], (ENC_H, DEC_H))                      # Wa rows for context
    w_fc = nrm(ks[16], (DEC_H, VOCAB))
    b_fc = nrm(ks[17], (1, VOCAB))

    raw = (w_ir, w_iz, w_in, w_hr, w_hz, w_hn,
           b_ir, b_iz, b_in, b_hr, b_hz, b_hn,
           w_attn, w_wa_h, w_wa_c, w_fc, b_fc)

    packed = {
        "emb": emb,
        "w_attn": w_attn,
        "w_i": jnp.concatenate([w_ir, w_iz, w_in], axis=1),                     # (E, 3H)
        "w_h": jnp.concatenate([w_hr, w_hz, w_hn], axis=1),                     # (H, 3H)
        "b_gi": jnp.concatenate([b_ir + b_hr, b_iz + b_hz, b_in], axis=1),      # (1, 3H)
        "b_gh": jnp.concatenate([jnp.zeros_like(b_hr), jnp.zeros_like(b_hz), b_hn], axis=1),
        "w_wa": jnp.concatenate([w_wa_h, w_wa_c], axis=0),                      # (H+EH, H)
        "w_fc": w_fc,
        "b_fc": b_fc,
    }
    return packed, raw, ks[18:]


# ------------------------- main -------------------------
if __name__ == "__main__":
    key = jax.random.PRNGKey(0)
    packed, raw, rest = init_params(key)

    encoder_hidden = jax.random.normal(rest[0], (1, BATCH, DEC_H), jnp.float32)
    encoder_outputs = jax.random.normal(rest[1], (ENC_SEQ, BATCH, ENC_H), jnp.float32)
    target = jax.random.randint(rest[2], (BATCH, SEQ_LEN + 1), 2, VOCAB, dtype=jnp.int32)

    outputs, final_hidden = decoder_forward(packed, encoder_hidden, encoder_outputs, target)
    outputs = jax.block_until_ready(outputs)
    assert outputs.shape == (SEQ_LEN + 1, BATCH, VOCAB)
    assert final_hidden.shape == (1, BATCH, DEC_H)

    # correctness check of the fused Pallas forward against a pure-JAX reference
    ref_out, ref_h = ref_forward(packed["emb"], raw, encoder_hidden, encoder_outputs, target)
    # slightly loose tolerance: attention denominator uses EUP approx reciprocal
    np.testing.assert_allclose(np.asarray(outputs), np.asarray(ref_out), rtol=5e-3, atol=5e-3)
    np.testing.assert_allclose(np.asarray(final_hidden), np.asarray(ref_h), rtol=5e-3, atol=5e-3)

    print("KERNEL_OK")
</pallas_src>

<mosaic_0001>
module attributes {stable_mosaic.version = 11 : i64} {
  func.func @decoder_fused_kernel(%arg0: i32, %arg1: memref<9x2xi32, #tpu.memory_space<smem>>, %arg2: memref<2x32xf32, #tpu.memory_space<vmem>>, %arg3: memref<32x16xf32, #tpu.memory_space<vmem>>, %arg4: memref<2x8x32xf32, #tpu.memory_space<vmem>>, %arg5: memref<2x32x8xf32, #tpu.memory_space<vmem>>, %arg6: memref<16x96xf32, #tpu.memory_space<vmem>>, %arg7: memref<32x96xf32, #tpu.memory_space<vmem>>, %arg8: memref<1x96xf32, #tpu.memory_space<vmem>>, %arg9: memref<1x96xf32, #tpu.memory_space<vmem>>, %arg10: memref<64x32xf32, #tpu.memory_space<vmem>>, %arg11: memref<32x32xf32, #tpu.memory_space<vmem>>, %arg12: memref<1x32xf32, #tpu.memory_space<vmem>>, %arg13: memref<1x2x32xf32, #tpu.memory_space<vmem>>, %arg14: memref<2x32xf32, #tpu.memory_space<vmem>>, %arg15: memref<2x32xf32, #tpu.memory_space<vmem>>) attributes {dimension_semantics = [#tpu.dimension_semantics<arbitrary>], iteration_bounds = array<i64: 9>, scalar_prefetch = 1 : i64, scratch_operands = 1 : i64, tpu.core_type = #tpu.core_type<tc>, window_params = [{pipeline_mode = #tpu.pipeline_mode<synchronous>, transform_indices = @transform_0, window_bounds = array<i64: 2, 32>}, {pipeline_mode = #tpu.pipeline_mode<synchronous>, transform_indices = @transform_1, window_bounds = array<i64: 32, 16>}, {pipeline_mode = #tpu.pipeline_mode<synchronous>, transform_indices = @transform_2, window_bounds = array<i64: 2, 8, 32>}, {pipeline_mode = #tpu.pipeline_mode<synchronous>, transform_indices = @transform_3, window_bounds = array<i64: 2, 32, 8>}, {pipeline_mode = #tpu.pipeline_mode<synchronous>, transform_indices = @transform_4, window_bounds = array<i64: 16, 96>}, {pipeline_mode = #tpu.pipeline_mode<synchronous>, transform_indices = @transform_5, window_bounds = array<i64: 32, 96>}, {pipeline_mode = #tpu.pipeline_mode<synchronous>, transform_indices = @transform_6, window_bounds = array<i64: 1, 96>}, {pipeline_mode = #tpu.pipeline_mode<synchronous>, transform_indices = @transform_7, window_bounds = array<i64: 1, 96>}, {pipeline_mode = #tpu.pipeline_mode<synchronous>, transform_indices = @transform_8, window_bounds = array<i64: 64, 32>}, {pipeline_mode = #tpu.pipeline_mode<synchronous>, transform_indices = @transform_9, window_bounds = array<i64: 32, 32>}, {pipeline_mode = #tpu.pipeline_mode<synchronous>, transform_indices = @transform_10, window_bounds = array<i64: 1, 32>}, {transform_indices = @transform_11, window_bounds = array<i64: 1, 2, 32>}, {pipeline_mode = #tpu.pipeline_mode<synchronous>, transform_indices = @transform_12, window_bounds = array<i64: 2, 32>}]} {
    %c0_i32 = arith.constant 0 : i32
    %0 = arith.cmpi eq, %arg0, %c0_i32 : i32
    %1 = arith.extui %0 : i1 to i32
    %c0_i32_0 = arith.constant 0 : i32
    %2 = arith.cmpi ne, %1, %c0_i32_0 : i32
    scf.if %2 {
      %c0_46 = arith.constant 0 : index
      %c0_47 = arith.constant 0 : index
      %115 = vector.load %arg2[%c0_46, %c0_47] : memref<2x32xf32, #tpu.memory_space<vmem>>, vector<2x32xf32>
      %c0_48 = arith.constant 0 : index
      %c0_49 = arith.constant 0 : index
      %116 = vector.load %arg15[%c0_48, %c0_49] : memref<2x32xf32, #tpu.memory_space<vmem>>, vector<2x32xf32>
      tpu.vector_store %arg15[%c0_48, %c0_49], %115 {strides = array<i32>} : memref<2x32xf32, #tpu.memory_space<vmem>>, vector<2x32xf32>,
    } else {
    }
    %3 = arith.index_cast %arg0 : i32 to index
    %c0 = arith.constant 0 : index
    %4 = memref.load %arg1[%3, %c0] : memref<9x2xi32, #tpu.memory_space<smem>>
    %5 = tpu.iota {dimensions = array<i32: 1>} : vector<1x32xi32>
    %6 = vector.broadcast %4 : i32 to vector<1x32xi32>
    %7 = arith.cmpi eq, %5, %6 : vector<1x32xi32>
    %8 = arith.extui %7 : vector<1x32xi1> to vector<1x32xi32>
    %9 = arith.sitofp %8 : vector<1x32xi32> to vector<1x32xf32>
    %10 = arith.index_cast %arg0 : i32 to index
    %c1 = arith.constant 1 : index
    %11 = memref.load %arg1[%10, %c1] : memref<9x2xi32, #tpu.memory_space<smem>>
    %12 = tpu.iota {dimensions = array<i32: 1>} : vector<1x32xi32>
    %13 = vector.broadcast %11 : i32 to vector<1x32xi32>
    %14 = arith.cmpi eq, %12, %13 : vector<1x32xi32>
    %15 = arith.extui %14 : vector<1x32xi1> to vector<1x32xi32>
    %16 = arith.sitofp %15 : vector<1x32xi32> to vector<1x32xf32>
    %17 = tpu.concatenate %9, %16 in 0 : vector<1x32xf32>, vector<1x32xf32> -> vector<2x32xf32>
    %c0_1 = arith.constant 0 : index
    %c0_2 = arith.constant 0 : index
    %18 = vector.load %arg3[%c0_1, %c0_2] : memref<32x16xf32, #tpu.memory_space<vmem>>, vector<32x16xf32>
    %cst = arith.constant dense<0.000000e+00> : vector<2x16xf32>
    %19 = tpu.matmul %17, %18, %cst {dimension_numbers = #tpu.dot_dimension_numbers<[1], [0], [0], [1], [0, 0, 1, 1], [], []>} : vector<2x32xf32>, vector<32x16xf32>, vector<2x16xf32> -> vector<2x16xf32>
    %c0_3 = arith.constant 0 : index
    %c0_4 = arith.constant 0 : index
    %20 = vector.load %arg15[%c0_3, %c0_4] : memref<2x32xf32, #tpu.memory_space<vmem>>, vector<2x32xf32>
    %c0_5 = arith.constant 0 : index
    %c0_6 = arith.constant 0 : index
    %21 = vector.load %arg6[%c0_5, %c0_6] : memref<16x96xf32, #tpu.memory_space<vmem>>, vector<16x96xf32>
    %cst_7 = arith.constant dense<0.000000e+00> : vector<2x96xf32>
    %22 = tpu.matmul %19, %21, %cst_7 {dimension_numbers = #tpu.dot_dimension_numbers<[1], [0], [0], [1], [0, 0, 1, 1], [], []>} : vector<2x16xf32>, vector<16x96xf32>, vector<2x96xf32> -> vector<2x96xf32>
    %c0_8 = arith.constant 0 : index
    %c0_9 = arith.constant 0 : index
    %23 = vector.load %arg8[%c0_8, %c0_9] : memref<1x96xf32, #tpu.memory_space<vmem>>, vector<1x96xf32>
    %24 = vector.broadcast %23 : vector<1x96xf32> to vector<2x96xf32>
    %25 = arith.addf %22, %24 : vector<2x96xf32>
    %c0_10 = arith.constant 0 : index
    %c0_11 = arith.constant 0 : index
    %26 = vector.load %arg7[%c0_10, %c0_11] : memref<32x96xf32, #tpu.memory_space<vmem>>, vector<32x96xf32>
    %cst_12 = arith.constant dense<0.000000e+00> : vector<2x96xf32>
    %27 = tpu.matmul %20, %26, %cst_12 {dimension_numbers = #tpu.dot_dimension_numbers<[1], [0], [0], [1], [0, 0, 1, 1], [], []>} : vector<2x32xf32>, vector<32x96xf32>, vector<2x96xf32> -> vector<2x96xf32>
    %c0_13 = arith.constant 0 : index
    %c0_14 = arith.constant 0 : index
    %28 = vector.load %arg9[%c0_13, %c0_14] : memref<1x96xf32, #tpu.memory_space<vmem>>, vector<1x96xf32>
    %29 = vector.broadcast %28 : vector<1x96xf32> to vector<2x96xf32>
    %30 = arith.addf %27, %29 : vector<2x96xf32>
    %31 = vector.extract_strided_slice %25 {offsets = [0, 0], sizes = [2, 32], strides = [1, 1]} : vector<2x96xf32> to vector<2x32xf32>
    %32 = vector.extract_strided_slice %30 {offsets = [0, 0], sizes = [2, 32], strides = [1, 1]} : vector<2x96xf32> to vector<2x32xf32>
    %33 = arith.addf %31, %32 : vector<2x32xf32>
    %34 = arith.negf %33 : vector<2x32xf32>
    %35 = math.exp %34 : vector<2x32xf32>
    %cst_15 = arith.constant 1.000000e+00 : f32
    %36 = vector.broadcast %cst_15 : f32 to vector<2x32xf32>
    %37 = arith.addf %36, %35 : vector<2x32xf32>
    %38 = arith.divf %36, %37 : vector<2x32xf32>
    %39 = vector.extract_strided_slice %25 {offsets = [0, 32], sizes = [2, 32], strides = [1, 1]} : vector<2x96xf32> to vector<2x32xf32>
    %40 = vector.extract_strided_slice %30 {offsets = [0, 32], sizes = [2, 32], strides = [1, 1]} : vector<2x96xf32> to vector<2x32xf32>
    %41 = arith.addf %39, %40 : vector<2x32xf32>
    %42 = arith.negf %41 : vector<2x32xf32>
    %43 = math.exp %42 : vector<2x32xf32>
    %cst_16 = arith.constant 1.000000e+00 : f32
    %44 = vector.broadcast %cst_16 : f32 to vector<2x32xf32>
    %45 = arith.addf %44, %43 : vector<2x32xf32>
    %46 = arith.divf %44, %45 : vector<2x32xf32>
    %47 = vector.extract_strided_slice %25 {offsets = [0, 64], sizes = [2, 32], strides = [1, 1]} : vector<2x96xf32> to vector<2x32xf32>
    %48 = vector.extract_strided_slice %30 {offsets = [0, 64], sizes = [2, 32], strides = [1, 1]} : vector<2x96xf32> to vector<2x32xf32>
    %49 = arith.mulf %38, %48 : vector<2x32xf32>
    %50 = arith.addf %47, %49 : vector<2x32xf32>
    %51 = math.tanh %50 : vector<2x32xf32>
    %cst_17 = arith.constant 1.000000e+00 : f32
    %52 = vector.broadcast %cst_17 : f32 to vector<2x32xf32>
    %53 = arith.subf %52, %46 : vector<2x32xf32>
    %54 = arith.mulf %53, %51 : vector<2x32xf32>
    %55 = arith.mulf %46, %20 : vector<2x32xf32>
    %56 = arith.addf %54, %55 : vector<2x32xf32>
    %c0_18 = arith.constant 0 : index
    %c0_19 = arith.constant 0 : index
    %c0_20 = arith.constant 0 : index
    %57 = vector.load %arg5[%c0_18, %c0_19, %c0_20] : memref<2x32x8xf32, #tpu.memory_space<vmem>>, vector<2x32x8xf32>
    %c0_21 = arith.constant 0 : index
    %c0_22 = arith.constant 0 : index
    %c0_23 = arith.constant 0 : index
    %58 = vector.load %arg4[%c0_21, %c0_22, %c0_23] : memref<2x8x32xf32, #tpu.memory_space<vmem>>, vector<2x8x32xf32>
    %59 = vector.extract_strided_slice %56 {offsets = [0, 0], sizes = [1, 32], strides = [1, 1]} : vector<2x32xf32> to vector<1x32xf32>
    %60 = vector.extract_strided_slice %57 {offsets = [0, 0, 0], sizes = [1, 32, 8], strides = [1, 1, 1]} : vector<2x32x8xf32> to vector<1x32x8xf32>
    %61 = vector.shape_cast %60 : vector<1x32x8xf32> to vector<32x8xf32>
    %cst_24 = arith.constant dense<0.000000e+00> : vector<1x8xf32>
    %62 = tpu.matmul %59, %61, %cst_24 {dimension_numbers = #tpu.dot_dimension_numbers<[1], [0], [0], [1], [0, 0, 1, 1], [], []>} : vector<1x32xf32>, vector<32x8xf32>, vector<1x8xf32> -> vector<1x8xf32>
    %63 = vector.extract_strided_slice %56 {offsets = [1, 0], sizes = [1, 32], strides = [1, 1]} : vector<2x32xf32> to vector<1x32xf32>
    %64 = vector.extract_strided_slice %57 {offsets = [1, 0, 0], sizes = [1, 32, 8], strides = [1, 1, 1]} : vector<2x32x8xf32> to vector<1x32x8xf32>
    %65 = vector.shape_cast %64 : vector<1x32x8xf32> to vector<32x8xf32>
    %cst_25 = arith.constant dense<0.000000e+00> : vector<1x8xf32>
    %66 = tpu.matmul %63, %65, %cst_25 {dimension_numbers = #tpu.dot_dimension_numbers<[1], [0], [0], [1], [0, 0, 1, 1], [], []>} : vector<1x32xf32>, vector<32x8xf32>, vector<1x8xf32> -> vector<1x8xf32>
    %67 = tpu.concatenate %62, %66 in 0 : vector<1x8xf32>, vector<1x8xf32> -> vector<2x8xf32>
    %cst_26 = arith.constant dense<0xFF800000> : vector<2xf32>
    %68 = vector.multi_reduction <maximumf>, %67, %cst_26 [1] : vector<2x8xf32> to vector<2xf32>
    %69 = vector.shape_cast %68 : vector<2xf32> to vector<2x1xf32>
    %70 = vector.broadcast %69 : vector<2x1xf32> to vector<2x8xf32>
    %71 = arith.subf %67, %70 : vector<2x8xf32>
    %72 = math.exp %71 : vector<2x8xf32>
    %cst_27 = arith.constant dense<0.000000e+00> : vector<2xf32>
    %73 = vector.multi_reduction <add>, %72, %cst_27 [1] : vector<2x8xf32> to vector<2xf32>
    %74 = vector.shape_cast %73 : vector<2xf32> to vector<2x1xf32>
    %75 = tpu.reciprocal %74 {approx = true} : vector<2x1xf32> -> vector<2x1xf32>
    %76 = vector.broadcast %75 : vector<2x1xf32> to vector<2x8xf32>
    %77 = arith.mulf %72, %76 : vector<2x8xf32>
    %78 = vector.extract_strided_slice %77 {offsets = [0, 0], sizes = [1, 8], strides = [1, 1]} : vector<2x8xf32> to vector<1x8xf32>
    %79 = vector.extract_strided_slice %58 {offsets = [0, 0, 0], sizes = [1, 8, 32], strides = [1, 1, 1]} : vector<2x8x32xf32> to vector<1x8x32xf32>
    %80 = vector.shape_cast %79 : vector<1x8x32xf32> to vector<8x32xf32>
    %cst_28 = arith.constant dense<0.000000e+00> : vector<1x32xf32>
    %81 = tpu.matmul %78, %80, %cst_28 {dimension_numbers = #tpu.dot_dimension_numbers<[1], [0], [0], [1], [0, 0, 1, 1], [], []>} : vector<1x8xf32>, vector<8x32xf32>, vector<1x32xf32> -> vector<1x32xf32>
    %82 = vector.extract_strided_slice %77 {offsets = [1, 0], sizes = [1, 8], strides = [1, 1]} : vector<2x8xf32> to vector<1x8xf32>
    %83 = vector.extract_strided_slice %58 {offsets = [1, 0, 0], sizes = [1, 8, 32], strides = [1, 1, 1]} : vector<2x8x32xf32> to vector<1x8x32xf32>
    %84 = vector.shape_cast %83 : vector<1x8x32xf32> to vector<8x32xf32>
    %cst_29 = arith.constant dense<0.000000e+00> : vector<1x32xf32>
    %85 = tpu.matmul %82, %84, %cst_29 {dimension_numbers = #tpu.dot_dimension_numbers<[1], [0], [0], [1], [0, 0, 1, 1], [], []>} : vector<1x8xf32>, vector<8x32xf32>, vector<1x32xf32> -> vector<1x32xf32>
    %86 = tpu.concatenate %81, %85 in 0 : vector<1x32xf32>, vector<1x32xf32> -> vector<2x32xf32>
    %87 = tpu.concatenate %56, %86 in 1 : vector<2x32xf32>, vector<2x32xf32> -> vector<2x64xf32>
    %c0_30 = arith.constant 0 : index
    %c0_31 = arith.constant 0 : index
    %88 = vector.load %arg10[%c0_30, %c0_31] : memref<64x32xf32, #tpu.memory_space<vmem>>, vector<64x32xf32>
    %cst_32 = arith.constant dense<0.000000e+00> : vector<2x32xf32>
    %89 = tpu.matmul %87, %88, %cst_32 {dimension_numbers = #tpu.dot_dimension_numbers<[1], [0], [0], [1], [0, 0, 1, 1], [], []>} : vector<2x64xf32>, vector<64x32xf32>, vector<2x32xf32> -> vector<2x32xf32>
    %90 = math.tanh %89 : vector<2x32xf32>
    %c0_33 = arith.constant 0 : index
    %c0_34 = arith.constant 0 : index
    %91 = vector.load %arg11[%c0_33, %c0_34] : memref<32x32xf32, #tpu.memory_space<vmem>>, vector<32x32xf32>
    %cst_35 = arith.constant dense<0.000000e+00> : vector<2x32xf32>
    %92 = tpu.matmul %90, %91, %cst_35 {dimension_numbers = #tpu.dot_dimension_numbers<[1], [0], [0], [1], [0, 0, 1, 1], [], []>} : vector<2x32xf32>, vector<32x32xf32>, vector<2x32xf32> -> vector<2x32xf32>
    %c0_36 = arith.constant 0 : index
    %c0_37 = arith.constant 0 : index
    %93 = vector.load %arg12[%c0_36, %c0_37] : memref<1x32xf32, #tpu.memory_space<vmem>>, vector<1x32xf32>
    %94 = vector.broadcast %93 : vector<1x32xf32> to vector<2x32xf32>
    %95 = arith.addf %92, %94 : vector<2x32xf32>
    %cst_38 = arith.constant dense<0xFF800000> : vector<2xf32>
    %96 = vector.multi_reduction <maximumf>, %95, %cst_38 [1] : vector<2x32xf32> to vector<2xf32>
    %97 = vector.shape_cast %96 : vector<2xf32> to vector<2x1xf32>
    %98 = vector.broadcast %97 : vector<2x1xf32> to vector<2x32xf32>
    %99 = arith.subf %95, %98 : vector<2x32xf32>
    %100 = math.exp %99 : vector<2x32xf32>
    %cst_39 = arith.constant dense<0.000000e+00> : vector<2xf32>
    %101 = vector.multi_reduction <add>, %100, %cst_39 [1] : vector<2x32xf32> to vector<2xf32>
    %102 = vector.shape_cast %101 : vector<2xf32> to vector<2x1xf32>
    %103 = math.log %102 : vector<2x1xf32>
    %104 = vector.broadcast %97 : vector<2x1xf32> to vector<2x32xf32>
    %105 = arith.subf %95, %104 : vector<2x32xf32>
    %106 = vector.broadcast %103 : vector<2x1xf32> to vector<2x32xf32>
    %107 = arith.subf %105, %106 : vector<2x32xf32>
    %c0_40 = arith.constant 0 : index
    %c0_41 = arith.constant 0 : index
    %c0_42 = arith.constant 0 : index
    %108 = vector.load %arg13[%c0_40, %c0_41, %c0_42] : memref<1x2x32xf32, #tpu.memory_space<vmem>>, vector<1x2x32xf32>
    %109 = vector.shape_cast %108 : vector<1x2x32xf32> to vector<2x32xf32>
    %110 = vector.shape_cast %107 : vector<2x32xf32> to vector<1x2x32xf32>
    tpu.vector_store %arg13[%c0_40, %c0_41, %c0_42], %110 {strides = array<i32>} : memref<1x2x32xf32, #tpu.memory_space<vmem>>, vector<1x2x32xf32>,
    %c0_43 = arith.constant 0 : index
    %c0_44 = arith.constant 0 : index
    %111 = vector.load %arg15[%c0_43, %c0_44] : memref<2x32xf32, #tpu.memory_space<vmem>>, vector<2x32xf32>
    tpu.vector_store %arg15[%c0_43, %c0_44], %56 {strides = array<i32>} : memref<2x32xf32, #tpu.memory_space<vmem>>, vector<2x32xf32>,
    %c8_i32 = arith.constant 8 : i32
    %112 = arith.cmpi eq, %arg0, %c8_i32 : i32
    %113 = arith.extui %112 : i1 to i32
    %c0_i32_45 = arith.constant 0 : i32
    %114 = arith.cmpi ne, %113, %c0_i32_45 : i32
    scf.if %114 {
      %c0_46 = arith.constant 0 : index
      %c0_47 = arith.constant 0 : index
      %115 = vector.load %arg14[%c0_46, %c0_47] : memref<2x32xf32, #tpu.memory_space<vmem>>, vector<2x32xf32>
      tpu.vector_store %arg14[%c0_46, %c0_47], %56 {strides = array<i32>} : memref<2x32xf32, #tpu.memory_space<vmem>>, vector<2x32xf32>,
    } else {
    }
    return
  }
  func.func @transform_0(%arg0: i32, %arg1: memref<9x2xi32, #tpu.memory_space<smem>>) -> (i32, i32) {
    %c0_i32 = arith.constant 0 : i32
    %c0_i32_0 = arith.constant 0 : i32
    %c0_i32_1 = arith.constant 0 : i32
    return %c0_i32, %c0_i32_0 : i32, i32
  }
  func.func @transform_1(%arg0: i32, %arg1: memref<9x2xi32, #tpu.memory_space<smem>>) -> (i32, i32) {
    %c0_i32 = arith.constant 0 : i32
    %c0_i32_0 = arith.constant 0 : i32
    %c0_i32_1 = arith.constant 0 : i32
    return %c0_i32, %c0_i32_0 : i32, i32
  }
  func.func @transform_2(%arg0: i32, %arg1: memref<9x2xi32, #tpu.memory_space<smem>>) -> (i32, i32, i32) {
    %c0_i32 = arith.constant 0 : i32
    %c0_i32_0 = arith.constant 0 : i32
    %c0_i32_1 = arith.constant 0 : i32
    %c0_i32_2 = arith.constant 0 : i32
    return %c0_i32, %c0_i32_0, %c0_i32_1 : i32, i32, i32
  }
  func.func @transform_3(%arg0: i32, %arg1: memref<9x2xi32, #tpu.memory_space<smem>>) -> (i32, i32, i32) {
    %c0_i32 = arith.constant 0 : i32
    %c0_i32_0 = arith.constant 0 : i32
    %c0_i32_1 = arith.constant 0 : i32
    %c0_i32_2 = arith.constant 0 : i32
    return %c0_i32, %c0_i32_0, %c0_i32_1 : i32, i32, i32
  }
  func.func @transform_4(%arg0: i32, %arg1: memref<9x2xi32, #tpu.memory_space<smem>>) -> (i32, i32) {
    %c0_i32 = arith.constant 0 : i32
    %c0_i32_0 = arith.constant 0 : i32
    %c0_i32_1 = arith.constant 0 : i32
    return %c0_i32, %c0_i32_0 : i32, i32
  }
  func.func @transform_5(%arg0: i32, %arg1: memref<9x2xi32, #tpu.memory_space<smem>>) -> (i32, i32) {
    %c0_i32 = arith.constant 0 : i32
    %c0_i32_0 = arith.constant 0 : i32
    %c0_i32_1 = arith.constant 0 : i32
    return %c0_i32, %c0_i32_0 : i32, i32
  }
  func.func @transform_6(%arg0: i32, %arg1: memref<9x2xi32, #tpu.memory_space<smem>>) -> (i32, i32) {
    %c0_i32 = arith.constant 0 : i32
    %c0_i32_0 = arith.constant 0 : i32
    %c0_i32_1 = arith.constant 0 : i32
    return %c0_i32, %c0_i32_0 : i32, i32
  }
  func.func @transform_7(%arg0: i32, %arg1: memref<9x2xi32, #tpu.memory_space<smem>>) -> (i32, i32) {
    %c0_i32 = arith.constant 0 : i32
    %c0_i32_0 = arith.constant 0 : i32
    %c0_i32_1 = arith.constant 0 : i32
    return %c0_i32, %c0_i32_0 : i32, i32
  }
  func.func @transform_8(%arg0: i32, %arg1: memref<9x2xi32, #tpu.memory_space<smem>>) -> (i32, i32) {
    %c0_i32 = arith.constant 0 : i32
    %c0_i32_0 = arith.constant 0 : i32
    %c0_i32_1 = arith.constant 0 : i32
    return %c0_i32, %c0_i32_0 : i32, i32
  }
  func.func @transform_9(%arg0: i32, %arg1: memref<9x2xi32, #tpu.memory_space<smem>>) -> (i32, i32) {
    %c0_i32 = arith.constant 0 : i32
    %c0_i32_0 = arith.constant 0 : i32
    %c0_i32_1 = arith.constant 0 : i32
    return %c0_i32, %c0_i32_0 : i32, i32
  }
  func.func @transform_10(%arg0: i32, %arg1: memref<9x2xi32, #tpu.memory_space<smem>>) -> (i32, i32) {
    %c0_i32 = arith.constant 0 : i32
    %c0_i32_0 = arith.constant 0 : i32
    %c0_i32_1 = arith.constant 0 : i32
    return %c0_i32, %c0_i32_0 : i32, i32
  }
  func.func @transform_11(%arg0: i32, %arg1: memref<9x2xi32, #tpu.memory_space<smem>>) -> (i32, i32, i32) {
    %c0_i32 = arith.constant 0 : i32
    %c0_i32_0 = arith.constant 0 : i32
    %c0_i32_1 = arith.constant 0 : i32
    return %arg0, %c0_i32, %c0_i32_0 : i32, i32, i32
  }
  func.func @transform_12(%arg0: i32, %arg1: memref<9x2xi32, #tpu.memory_space<smem>>) -> (i32, i32) {
    %c0_i32 = arith.constant 0 : i32
    %c0_i32_0 = arith.constant 0 : i32
    %c0_i32_1 = arith.constant 0 : i32
    return %c0_i32, %c0_i32_0 : i32, i32
  }
}

</mosaic_0001>

<llo_original>
// kernel: decoder_forward.1
$region0: #{decoder_forward.1}
  #allocation0 [shape = 'u32[]', space=smem, size = 0x4, offset = 0x4, fixed_abs, tag = 'smem constant byte address 0x4 - core index']
  #allocation1 [shape = 'u32[144,128]{1,0:T(1,128)}', space=vmem, size = 0x12000, scoped, tag = 'internal scratch']
  #allocation2 [shape = 'f32[2,32]{1,0:T(2,128)}', space=vmem, size = 0x400, scoped, tag = 'scratch operand']
  #allocation3 [shape = 's32[1]{0}', space=sflag, size = 0x4, scoped, tag = 'scoped memory for decoder_forward.1']
  #allocation4 [shape = 'u8[8192]{0}', space=smem, size = 0x2000, scoped, tag = 'prefetched SMEM operand 0']
  %s0 = inlined_call_operand.vmem [shape: s32[9,2], index: 0, kind: input, shape index: {}]
  %s1 = inlined_call_operand.vmem [shape: f32[2,32], index: 1, kind: input, shape index: {}]
  %s2 = inlined_call_operand.vmem [shape: f32[32,16], index: 2, kind: input, shape index: {}]
  %s3 = inlined_call_operand.vmem [shape: f32[2,8,32], index: 3, kind: input, shape index: {}]
  %s4 = inlined_call_operand.vmem [shape: f32[2,32,8], index: 4, kind: input, shape index: {}]
  %s5 = inlined_call_operand.vmem [shape: f32[16,96], index: 5, kind: input, shape index: {}]
  %s6 = inlined_call_operand.vmem [shape: f32[32,96], index: 6, kind: input, shape index: {}]
  %s7 = inlined_call_operand.vmem [shape: f32[1,96], index: 7, kind: input, shape index: {}]
  %s8 = inlined_call_operand.vmem [shape: f32[1,96], index: 8, kind: input, shape index: {}]
  %s9 = inlined_call_operand.vmem [shape: f32[64,32], index: 9, kind: input, shape index: {}]
  %s10 = inlined_call_operand.vmem [shape: f32[32,32], index: 10, kind: input, shape index: {}]
  %s11 = inlined_call_operand.vmem [shape: f32[1,32], index: 11, kind: input, shape index: {}]
  %s12 = inlined_call_operand.hbm [shape: f32[9,2,32], index: 12, kind: output, shape index: {0}]
  %s13 = inlined_call_operand.hbm [shape: f32[2,32], index: 13, kind: output, shape index: {1}]
  %14 = xla_tuple %s12, %s13
  %s15 = sld [smem:[#allocation0]]
  $region93: #{decoder_forward.1} parent=0
    _
  %s17 = ssub.s32 1, %s15
  %s18 = scalar_select 0, %s17, %s15
  %s19 = sshll.u32 %s0, 4
  %s20 = int_to_ptr.vmem [resolvable:$true] %s19
  %22 = dma.vmem_to_smem %s20, 256, [#allocation4], [#allocation3]
  %23 = dma.done [#allocation3], 256
  %24 = sfence
  $region1: #{decoder_forward.1} parent=0
    #allocation5 [shape = 'u8[2048]{0}', space=vmem, size = 0x800, scoped, tag = 'output window, operand 0']
    #allocation6 [shape = 's32[2]{0}', space=sflag, size = 0x8, scoped, tag = 'scoped memory for decoder_forward.1']
    #allocation7 [shape = 'u8[1024]{0}', space=vmem, size = 0x400, scoped, tag = 'output window, operand 1, single buffered']
    #allocation8 [shape = 's32[1]{0}', space=sflag, size = 0x4, scoped, tag = 'scoped memory for decoder_forward.1']
    %25 = vsyncpa [#allocation6], 0
    %s26 = scalar_lea.sflag [#allocation6], 1
    %27 = vsyncpa %s26, 0
    %28 = vsyncpa [#allocation8], 0
    loop: start=0, step=1, limit=11
    $region2: #{decoder_forward.1} parent=1 // loop_pre_header
      _
    $region3: #{decoder_forward.1} parent=1 // loop_header
      %s30 = sphi 0, %s34
      %p31 = scmp.ge.s32.totalorder %s30, 11
      %s38 = sphi 0, %s38
      %s40 = sphi 0, %s38
      %s41 = sphi 0, %s40
      %s55 = sphi 0, %s41
      %s59 = sphi 0, %s59
      %s61 = sphi 0, %s59
      %s62 = sphi 0, %s61
      %s76 = sphi 0, %s62
      %s80 = sphi 0, %s80
      %s82 = sphi 0, %s80
      %s83 = sphi 0, %s82
      %s97 = sphi 0, %s83
      %s101 = sphi 0, %s101
      %s103 = sphi 0, %s101
      %s104 = sphi 0, %s103
      %s118 = sphi 0, %s104
      %s122 = sphi 0, %s122
      %s124 = sphi 0, %s122
      %s125 = sphi 0, %s124
      %s139 = sphi 0, %s125
      %s143 = sphi 0, %s143
      %s145 = sphi 0, %s143
      %s146 = sphi 0, %s145
      %s160 = sphi 0, %s146
      %s164 = sphi 0, %s164
      %s166 = sphi 0, %s164
      %s167 = sphi 0, %s166
      %s181 = sphi 0, %s167
      %s185 = sphi 0, %s185
      %s187 = sphi 0, %s185
      %s188 = sphi 0, %s187
      %s202 = sphi 0, %s188
      %s206 = sphi 0, %s206
      %s208 = sphi 0, %s206
      %s209 = sphi 0, %s208
      %s223 = sphi 0, %s209
      %s227 = sphi 0, %s227
      %s229 = sphi 0, %s227
      %s230 = sphi 0, %s229
      %s244 = sphi 0, %s230
      %s248 = sphi 0, %s248
      %s250 = sphi 0, %s248
      %s251 = sphi 0, %s250
      %s265 = sphi 0, %s251
      %s271 = sphi 0, %s273
      %s274 = sphi 0, %s271
      %s275 = sphi 0, %s274
      %s291 = sphi 0, %s275
      %s295 = sphi 0, %s295
      %s297 = sphi 0, %s295
      %s298 = sphi 0, %s297
      %s312 = sphi 0, %s298
    $region4: #{decoder_forward.1} parent=1 // loop_header_branch
      %33 = sbr.rel (%p31) target = $region8
    $region5: #{decoder_forward.1} parent=1 // loop_body
      %s35 = ssub.s32 %s30, 1
      %s36 = ssub.s32 %s30, 2
      %s37 = sadd.s32 %s30, 1
      %s39 = sadd.s32 %s38, 1
      %p42 = scmp.eq.s32.totalorder %s30, 8
      %p43 = scmp.ne.s32.totalorder %s38, %s40
      %p44 = scmp.eq.s32.totalorder %s30, 0
      %p45 = por %p43, %p44
      %p46 = scmp.ne.s32.totalorder %s38, %s40
      %p47 = scmp.eq.s32.totalorder %s35, 8
      %p48 = por %p46, %p47
      %p49 = scmp.ne.s32.totalorder %s40, %s41
      %p50 = scmp.eq.s32.totalorder %s35, 0
      %p51 = por %p49, %p50
      %p52 = scmp.ne.s32.totalorder %s40, %s41
      %p53 = scmp.eq.s32.totalorder %s36, 8
      %p54 = por %p52, %p53
      %p56 = scmp.ne.s32.totalorder %s41, %s55
      %p57 = scmp.eq.s32.totalorder %s36, 0
      %p58 = por %p56, %p57
      %s60 = sadd.s32 %s59, 1
      %p63 = scmp.eq.s32.totalorder %s30, 8
      %p64 = scmp.ne.s32.totalorder %s59, %s61
      %p65 = scmp.eq.s32.totalorder %s30, 0
      %p66 = por %p64, %p65
      %p67 = scmp.ne.s32.totalorder %s59, %s61
      %p68 = scmp.eq.s32.totalorder %s35, 8
      %p69 = por %p67, %p68
      %p70 = scmp.ne.s32.totalorder %s61, %s62
      %p71 = scmp.eq.s32.totalorder %s35, 0
      %p72 = por %p70, %p71
      %p73 = scmp.ne.s32.totalorder %s61, %s62
      %p74 = scmp.eq.s32.totalorder %s36, 8
      %p75 = por %p73, %p74
      %p77 = scmp.ne.s32.totalorder %s62, %s76
      %p78 = scmp.eq.s32.totalorder %s36, 0
      %p79 = por %p77, %p78
      %s81 = sadd.s32 %s80, 1
      %p84 = scmp.eq.s32.totalorder %s30, 8
      %p85 = scmp.ne.s32.totalorder %s80, %s82
      %p86 = scmp.eq.s32.totalorder %s30, 0
      %p87 = por %p85, %p86
      %p88 = scmp.ne.s32.totalorder %s80, %s82
      %p89 = scmp.eq.s32.totalorder %s35, 8
      %p90 = por %p88, %p89
      %p91 = scmp.ne.s32.totalorder %s82, %s83
      %p92 = scmp.eq.s32.totalorder %s35, 0
      %p93 = por %p91, %p92
      %p94 = scmp.ne.s32.totalorder %s82, %s83
      %p95 = scmp.eq.s32.totalorder %s36, 8
      %p96 = por %p94, %p95
      %p98 = scmp.ne.s32.totalorder %s83, %s97
      %p99 = scmp.eq.s32.totalorder %s36, 0
      %p100 = por %p98, %p99
      %s102 = sadd.s32 %s101, 1
      %p105 = scmp.eq.s32.totalorder %s30, 8
      %p106 = scmp.ne.s32.totalorder %s101, %s103
      %p107 = scmp.eq.s32.totalorder %s30, 0
      %p108 = por %p106, %p107
      %p109 = scmp.ne.s32.totalorder %s101, %s103
      %p110 = scmp.eq.s32.totalorder %s35, 8
      %p111 = por %p109, %p110
      %p112 = scmp.ne.s32.totalorder %s103, %s104
      %p113 = scmp.eq.s32.totalorder %s35, 0
      %p114 = por %p112, %p113
      %p115 = scmp.ne.s32.totalorder %s103, %s104
      %p116 = scmp.eq.s32.totalorder %s36, 8
      %p117 = por %p115, %p116
      %p119 = scmp.ne.s32.totalorder %s104, %s118
      %p120 = scmp.eq.s32.totalorder %s36, 0
      %p121 = por %p119, %p120
      %s123 = sadd.s32 %s122, 1
      %p126 = scmp.eq.s32.totalorder %s30, 8
      %p127 = scmp.ne.s32.totalorder %s122, %s124
      %p128 = scmp.eq.s32.totalorder %s30, 0
      %p129 = por %p127, %p128
      %p130 = scmp.ne.s32.totalorder %s122, %s124
      %p131 = scmp.eq.s32.totalorder %s35, 8
      %p132 = por %p130, %p131
      %p133 = scmp.ne.s32.totalorder %s124, %s125
      %p134 = scmp.eq.s32.totalorder %s35, 0
      %p135 = por %p133, %p134
      %p136 = scmp.ne.s32.totalorder %s124, %s125
      %p137 = scmp.eq.s32.totalorder %s36, 8
      %p138 = por %p136, %p137
      %p140 = scmp.ne.s32.totalorder %s125, %s139
      %p141 = scmp.eq.s32.totalorder %s36, 0
      %p142 = por %p140, %p141
      %s144 = sadd.s32 %s143, 1
      %p147 = scmp.eq.s32.totalorder %s30, 8
      %p148 = scmp.ne.s32.totalorder %s143, %s145
      %p149 = scmp.eq.s32.totalorder %s30, 0
      %p150 = por %p148, %p149
      %p151 = scmp.ne.s32.totalorder %s143, %s145
      %p152 = scmp.eq.s32.totalorder %s35, 8
      %p153 = por %p151, %p152
      %p154 = scmp.ne.s32.totalorder %s145, %s146
      %p155 = scmp.eq.s32.totalorder %s35, 0
      %p156 = por %p154, %p155
      %p157 = scmp.ne.s32.totalorder %s145, %s146
      %p158 = scmp.eq.s32.totalorder %s36, 8
      %p159 = por %p157, %p158
      %p161 = scmp.ne.s32.totalorder %s146, %s160
      %p162 = scmp.eq.s32.totalorder %s36, 0
      %p163 = por %p161, %p162
      %s165 = sadd.s32 %s164, 1
      %p168 = scmp.eq.s32.totalorder %s30, 8
      %p169 = scmp.ne.s32.totalorder %s164, %s166
      %p170 = scmp.eq.s32.totalorder %s30, 0
      %p171 = por %p169, %p170
      %p172 = scmp.ne.s32.totalorder %s164, %s166
      %p173 = scmp.eq.s32.totalorder %s35, 8
      %p174 = por %p172, %p173
      %p175 = scmp.ne.s32.totalorder %s166, %s167
      %p176 = scmp.eq.s32.totalorder %s35, 0
      %p177 = por %p175, %p176
      %p178 = scmp.ne.s32.totalorder %s166, %s167
      %p179 = scmp.eq.s32.totalorder %s36, 8
      %p180 = por %p178, %p179
      %p182 = scmp.ne.s32.totalorder %s167, %s181
      %p183 = scmp.eq.s32.totalorder %s36, 0
      %p184 = por %p182, %p183
      %s186 = sadd.s32 %s185, 1
      %p189 = scmp.eq.s32.totalorder %s30, 8
      %p190 = scmp.ne.s32.totalorder %s185, %s187
      %p191 = scmp.eq.s32.totalorder %s30, 0
      %p192 = por %p190, %p191
      %p193 = scmp.ne.s32.totalorder %s185, %s187
      %p194 = scmp.eq.s32.totalorder %s35, 8
      %p195 = por %p193, %p194
      %p196 = scmp.ne.s32.totalorder %s187, %s188
      %p197 = scmp.eq.s32.totalorder %s35, 0
      %p198 = por %p196, %p197
      %p199 = scmp.ne.s32.totalorder %s187, %s188
      %p200 = scmp.eq.s32.totalorder %s36, 8
      %p201 = por %p199, %p200
      %p203 = scmp.ne.s32.totalorder %s188, %s202
      %p204 = scmp.eq.s32.totalorder %s36, 0
      %p205 = por %p203, %p204
      %s207 = sadd.s32 %s206, 1
      %p210 = scmp.eq.s32.totalorder %s30, 8
      %p211 = scmp.ne.s32.totalorder %s206, %s208
      %p212 = scmp.eq.s32.totalorder %s30, 0
      %p213 = por %p211, %p212
      %p214 = scmp.ne.s32.totalorder %s206, %s208
      %p215 = scmp.eq.s32.totalorder %s35, 8
      %p216 = por %p214, %p215
      %p217 = scmp.ne.s32.totalorder %s208, %s209
      %p218 = scmp.eq.s32.totalorder %s35, 0
      %p219 = por %p217, %p218
      %p220 = scmp.ne.s32.totalorder %s208, %s209
      %p221 = scmp.eq.s32.totalorder %s36, 8
      %p222 = por %p220, %p221
      %p224 = scmp.ne.s32.totalorder %s209, %s223
      %p225 = scmp.eq.s32.totalorder %s36, 0
      %p226 = por %p224, %p225
      %s228 = sadd.s32 %s227, 1
      %p231 = scmp.eq.s32.totalorder %s30, 8
      %p232 = scmp.ne.s32.totalorder %s227, %s229
      %p233 = scmp.eq.s32.totalorder %s30, 0
      %p234 = por %p232, %p233
      %p235 = scmp.ne.s32.totalorder %s227, %s229
      %p236 = scmp.eq.s32.totalorder %s35, 8
      %p237 = por %p235, %p236
      %p238 = scmp.ne.s32.totalorder %s229, %s230
      %p239 = scmp.eq.s32.totalorder %s35, 0
      %p240 = por %p238, %p239
      %p241 = scmp.ne.s32.totalorder %s229, %s230
      %p242 = scmp.eq.s32.totalorder %s36, 8
      %p243 = por %p241, %p242
      %p245 = scmp.ne.s32.totalorder %s230, %s244
      %p246 = scmp.eq.s32.totalorder %s36, 0
      %p247 = por %p245, %p246
      %s249 = sadd.s32 %s248, 1
      %p252 = scmp.eq.s32.totalorder %s30, 8
      %p253 = scmp.ne.s32.totalorder %s248, %s250
      %p254 = scmp.eq.s32.totalorder %s30, 0
      %p255 = por %p253, %p254
      %p256 = scmp.ne.s32.totalorder %s248, %s250
      %p257 = scmp.eq.s32.totalorder %s35, 8
      %p258 = por %p256, %p257
      %p259 = scmp.ne.s32.totalorder %s250, %s251
      %p260 = scmp.eq.s32.totalorder %s35, 0
      %p261 = por %p259, %p260
      %p262 = scmp.ne.s32.totalorder %s250, %s251
      %p263 = scmp.eq.s32.totalorder %s36, 8
      %p264 = por %p262, %p263
      %p266 = scmp.ne.s32.totalorder %s251, %s265
      %p267 = scmp.eq.s32.totalorder %s36, 0
      %p268 = por %p266, %p267
      %s269 = ssub.s32 %s30, %s37
      %p270 = scmp.eq.s32.totalorder %s269, 0
      %s272 = sadd.s32 %s271, 1
      %s273 = scalar_select %p270, %s271, %s272
      %p276 = pneg %p270
      %p277 = scmp.eq.s32.totalorder %s30, 8
      %p278 = por %p276, %p277
      %p279 = scmp.ne.s32.totalorder %s271, %s274
      %p280 = scmp.eq.s32.totalorder %s30, 0
      %p281 = por %p279, %p280
      %p282 = scmp.ne.s32.totalorder %s271, %s274
      %p283 = scmp.eq.s32.totalorder %s35, 8
      %p284 = por %p282, %p283
      %p285 = scmp.ne.s32.totalorder %s274, %s275
      %p286 = scmp.eq.s32.totalorder %s35, 0
      %p287 = por %p285, %p286
      %p288 = scmp.ne.s32.totalorder %s274, %s275
      %p289 = scmp.eq.s32.totalorder %s36, 8
      %p290 = por %p288, %p289
      %p292 = scmp.ne.s32.totalorder %s275, %s291
      %p293 = scmp.eq.s32.totalorder %s36, 0
      %p294 = por %p292, %p293
      %s296 = sadd.s32 %s295, 1
      %p299 = scmp.eq.s32.totalorder %s30, 8
      %p300 = scmp.ne.s32.totalorder %s295, %s297
      %p301 = scmp.eq.s32.totalorder %s30, 0
      %p302 = por %p300, %p301
      %p303 = scmp.ne.s32.totalorder %s295, %s297
      %p304 = scmp.eq.s32.totalorder %s35, 8
      %p305 = por %p303, %p304
      %p306 = scmp.ne.s32.totalorder %s297, %s298
      %p307 = scmp.eq.s32.totalorder %s35, 0
      %p308 = por %p306, %p307
      %p309 = scmp.ne.s32.totalorder %s297, %s298
      %p310 = scmp.eq.s32.totalorder %s36, 8
      %p311 = por %p309, %p310
      %p313 = scmp.ne.s32.totalorder %s298, %s312
      %p314 = scmp.eq.s32.totalorder %s36, 0
      %p315 = por %p313, %p314
      %p316 = scmp.le.s32.totalorder 1, %s30
      %p317 = scmp.lt.s32.totalorder %s30, 10
      %p318 = pnand %p316, %p317
      %p319 = pneg %p318
      // Predicated region
      $region9: #{decoder_forward.1} parent=5 // pred_check
        _
      $region10: #{decoder_forward.1} parent=5 // pred_check_branch
        %321 = sbr.rel (%p318) target = $region12
      $region11: #{decoder_forward.1} parent=5 // pred_region
        %s322 = ssub.s32 %s30, 1
        // Predicated region
        $region13: #{decoder_forward.1} parent=11 // pred_check
          %p323 = pneg %p51
        $region14: #{decoder_forward.1} parent=11 // pred_check_branch
          %325 = sbr.rel (%p323) target = $region16
        $region15: #{decoder_forward.1} parent=11 // pred_region
          _
        $region16: #{decoder_forward.1} parent=11 // pred_fallthru
          _
        // Predicated region
        $region17: #{decoder_forward.1} parent=11 // pred_check
          %p326 = pneg %p72
        $region18: #{decoder_forward.1} parent=11 // pred_check_branch
          %328 = sbr.rel (%p326) target = $region20
        $region19: #{decoder_forward.1} parent=11 // pred_region
          _
        $region20: #{decoder_forward.1} parent=11 // pred_fallthru
          _
        // Predicated region
        $region21: #{decoder_forward.1} parent=11 // pred_check
          %p329 = pneg %p93
        $region22: #{decoder_forward.1} parent=11 // pred_check_branch
          %331 = sbr.rel (%p329) target = $region24
        $region23: #{decoder_forward.1} parent=11 // pred_region
          _
        $region24: #{decoder_forward.1} parent=11 // pred_fallthru
          _
        // Predicated region
        $region25: #{decoder_forward.1} parent=11 // pred_check
          %p332 = pneg %p114
        $region26: #{decoder_forward.1} parent=11 // pred_check_branch
          %334 = sbr.rel (%p332) target = $region28
        $region27: #{decoder_forward.1} parent=11 // pred_region
          _
        $region28: #{decoder_forward.1} parent=11 // pred_fallthru
          _
        // Predicated region
        $region29: #{decoder_forward.1} parent=11 // pred_check
          %p335 = pneg %p135
        $region30: #{decoder_forward.1} parent=11 // pred_check_branch
          %337 = sbr.rel (%p335) target = $region32
        $region31: #{decoder_forward.1} parent=11 // pred_region
          _
        $region32: #{decoder_forward.1} parent=11 // pred_fallthru
          _
        // Predicated region
        $region33: #{decoder_forward.1} parent=11 // pred_check
          %p338 = pneg %p156
        $region34: #{decoder_forward.1} parent=11 // pred_check_branch
          %340 = sbr.rel (%p338) target = $region36
        $region35: #{decoder_forward.1} parent=11 // pred_region
          _
        $region36: #{decoder_forward.1} parent=11 // pred_fallthru
          _
        // Predicated region
        $region37: #{decoder_forward.1} parent=11 // pred_check
          %p341 = pneg %p177
        $region38: #{decoder_forward.1} parent=11 // pred_check_branch
          %343 = sbr.rel (%p341) target = $region40
        $region39: #{decoder_forward.1} parent=11 // pred_region
          _
        $region40: #{decoder_forward.1} parent=11 // pred_fallthru
          _
        // Predicated region
        $region41: #{decoder_forward.1} parent=11 // pred_check
          %p344 = pneg %p198
        $region42: #{decoder_forward.1} parent=11 // pred_check_branch
          %346 = sbr.rel (%p344) target = $region44
        $region43: #{decoder_forward.1} parent=11 // pred_region
          _
        $region44: #{decoder_forward.1} parent=11 // pred_fallthru
          _
        // Predicated region
        $region45: #{decoder_forward.1} parent=11 // pred_check
          %p347 = pneg %p219
        $region46: #{decoder_forward.1} parent=11 // pred_check_branch
          %349 = sbr.rel (%p347) target = $region48
        $region47: #{decoder_forward.1} parent=11 // pred_region
          _
        $region48: #{decoder_forward.1} parent=11 // pred_fallthru
          _
        // Predicated region
        $region49: #{decoder_forward.1} parent=11 // pred_check
          %p350 = pneg %p240
        $region50: #{decoder_forward.1} parent=11 // pred_check_branch
          %352 = sbr.rel (%p350) target = $region52
        $region51: #{decoder_forward.1} parent=11 // pred_region
          _
        $region52: #{decoder_forward.1} parent=11 // pred_fallthru
          _
        // Predicated region
        $region53: #{decoder_forward.1} parent=11 // pred_check
          %p353 = pneg %p261
        $region54: #{decoder_forward.1} parent=11 // pred_check_branch
          %355 = sbr.rel (%p353) target = $region56
        $region55: #{decoder_forward.1} parent=11 // pred_region
          _
        $region56: #{decoder_forward.1} parent=11 // pred_fallthru
          _
      $region12: #{decoder_forward.1} parent=5 // pred_fallthru
        _
      %p356 = scmp.lt.s32.totalorder %s30, 9
      // Predicated region
      $region57: #{decoder_forward.1} parent=5 // pred_check
        %p357 = pneg %p356
      $region58: #{decoder_forward.1} parent=5 // pred_check_branch
        %359 = sbr.rel (%p357) target = $region60
      $region59: #{decoder_forward.1} parent=5 // pred_region
        _
      $region60: #{decoder_forward.1} parent=5 // pred_fallthru
        _
      %p360 = scmp.le.s32.totalorder 1, %s30
      %p361 = scmp.lt.s32.totalorder %s30, 10
      %p362 = pnand %p360, %p361
      %p363 = pneg %p362
      // Predicated region
      $region61: #{decoder_forward.1} parent=5 // pred_check
        _
      $region62: #{decoder_forward.1} parent=5 // pred_check_branch
        %365 = sbr.rel (%p362) target = $region64
      $region63: #{decoder_forward.1} parent=5 // pred_region
        %s366 = ssub.s32 %s30, 1
        %p367 = pneg %p51
        %p368 = pneg %p48
        %p369 = pneg %p72
        %p370 = pneg %p69
        %p371 = pneg %p93
        %p372 = pneg %p90
        %p373 = pneg %p114
        %p374 = pneg %p111
        %p375 = pneg %p135
        %p376 = pneg %p132
        %p377 = pneg %p156
        %p378 = pneg %p153
        %p379 = pneg %p177
        %p380 = pneg %p174
        %p381 = pneg %p198
        %p382 = pneg %p195
        %p383 = pneg %p219
        %p384 = pneg %p216
        %p385 = pneg %p240
        %p386 = pneg %p237
        %p387 = pneg %p261
        %p388 = pneg %p258
        %p389 = pneg %p287
        %p390 = pneg %p284
        %s391 = sand.u32 %s274, 1
        %s392 = scalar_lea.sflag [#allocation6], %s391
        %s393 = sand.u32 %s274, 1
        %s394 = smul.addr %s393, 2
        %s395 = scalar_lea.vmem [#allocation5], %s394
        %p396 = pneg %p308
        %p397 = pneg %p305
        %p398 = scmp.eq.s32.totalorder %s35, 0
        // Predicated region
        $region65: #{decoder_forward.1} parent=63 // pred_check
          %p399 = pneg %p398
        $region66: #{decoder_forward.1} parent=63 // pred_check_branch
          %401 = sbr.rel (%p399) target = $region68
        $region67: #{decoder_forward.1} parent=63 // pred_region
          %v402 = vld [vmem:[%s1] sm:$0x3]
          %vm403 = vcmask 254976
          %404 = vst.msk [vmem:[#allocation2] sm:$0x3] %vm403, %v402
        $region68: #{decoder_forward.1} parent=63 // pred_fallthru
          _
        %s405 = smul.u32 %s35, 128
        %s406 = sld [smem:[#allocation4 + %s405]]
        %v407 = vlaneseq
        %v408 = vand.u32 %v407, 127
        %v409 = vstv %s406
        %vm410 = vcmp.eq.s32.totalorder %v408, %v409
        %v411 = vsel %vm410, 1, 0
        %v412 = vcvt.s32.f32 %v411
        %s413 = sadd.s32 %s405, 1
        %s414 = sld [smem:[#allocation4 + %s413]]
        %v415 = vstv %s414
        %vm416 = vcmp.eq.s32.totalorder %v408, %v415
        %v417 = vsel %vm416, 1, 0
        %v418 = vcvt.s32.f32 %v417
        %vm419 = vcmask 1040384
        %v420 = vsel %vm419, %v412, %v418
        %v421 = vld [vmem:[%s2] sm:$0xff]
        %v422 = vld [vmem:[%s2 + $0x8] sm:$0xff]
        %v423 = vld [vmem:[%s2 + $0x10] sm:$0xff]
        %v424 = vld [vmem:[%s2 + $0x18] sm:$0xff]
        %vm425 = vcmask 261120
        %v427 = vsel %vm425, %v420, 0
        %429 = vmatprep.subr.mxu0 0.0
        %430 = vmatpush1.msra.mxu0 %v421
        %431 = vmatprep.subr.mxu0 0.0
        %432 = vmatpush1.msra.mxu0 %v422
        %433 = vmatprep.subr.mxu0 0.0
        %434 = vmatpush1.msra.mxu0 %v423
        %435 = vmatprep.subr.mxu0 0.0
        %436 = vmatpush1.msra.mxu0 %v424
        %437 = vmatprep.subr.mxu0 0.0
        %438 = vmatpush1.msra.mxu0 0.0
        %439 = vmatprep.subr.mxu0 0.0
        %440 = vmatpush1.msra.mxu0 0.0
        %441 = vmatprep.subr.mxu0 0.0
        %442 = vmatpush1.msra.mxu0 0.0
        %443 = vmatprep.subr.mxu0 0.0
        %444 = vmatpush1.msra.mxu0 0.0
        %445 = vmatprep.subr.mxu0 0.0
        %446 = vmatpush1.msra.mxu0 0.0
        %447 = vmatprep.subr.mxu0 0.0
        %448 = vmatpush1.msra.mxu0 0.0
        %449 = vmatprep.subr.mxu0 0.0
        %450 = vmatpush1.msra.mxu0 0.0
        %451 = vmatprep.subr.mxu0 0.0
        %452 = vmatpush1.msra.mxu0 0.0
        %453 = vmatprep.subr.mxu0 0.0
        %454 = vmatpush1.msra.mxu0 0.0
        %455 = vmatprep.subr.mxu0 0.0
        %456 = vmatpush1.msra.mxu0 0.0
        %457 = vmatprep.subr.mxu0 0.0
        %458 = vmatpush1.msra.mxu0 0.0
        %459 = vmatprep.subr.mxu0 0.0
        %460 = vmatpush1.msra.mxu0 0.0
        %461 = vmatprep.subr.mxu0 0.0
        %462 = vmatpush1.msra.mxu0 0.0
        %463 = vmatprep.subr.mxu0 0.0
        %464 = vmatpush1.msra.mxu0 0.0
        %465 = vmatprep.subr.mxu0 0.0
        %466 = vmatpush1.msra.mxu0 0.0
        %467 = vmatprep.subr.mxu0 0.0
        %468 = vmatpush1.msra.mxu0 0.0
        %469 = vmatprep.subr.mxu0 0.0
        %470 = vmatpush1.msra.mxu0 0.0
        %471 = vmatprep.subr.mxu0 0.0
        %472 = vmatpush1.msra.mxu0 0.0
        %473 = vmatprep.subr.mxu0 0.0
        %474 = vmatpush1.msra.mxu0 0.0
        %475 = vmatprep.subr.mxu0 0.0
        %476 = vmatpush1.msra.mxu0 0.0
        %477 = vmatprep.subr.mxu0 0.0
        %478 = vmatpush1.msra.mxu0 0.0
        %479 = vmatprep.subr.mxu0 0.0
        %480 = vmatpush1.msra.mxu0 0.0
        %481 = vmatprep.subr.mxu0 0.0
        %482 = vmatpush1.msra.mxu0 0.0
        %483 = vmatprep.subr.mxu0 0.0
        %484 = vmatpush1.msra.mxu0 0.0
        %485 = vmatprep.subr.mxu0 0.0
        %486 = vmatpush1.msra.mxu0 0.0
        %487 = vmatprep.subr.mxu0 0.0
        %488 = vmatpush1.msra.mxu0 0.0
        %489 = vmatprep.subr.mxu0 0.0
        %490 = vmatpush1.msra.mxu0 0.0
        %491 = vmatprep.subr.mxu0 0.0
        %492 = vmatpush1.msra.mxu0 0.0
        %493 = vmatprep.mubr.f32.mxu0 0.0
        %494 = vmatmul.mubr.f32.gmra.mrb[0].mxu0 %v427
        %v495 = vpop.f32.mrb[0].mxu0
        %v496 = vadd.f32 0.0, %v495
        %v497 = vpop.f32.mrb[0].mxu0
        %498 = vdwg.mxu0
        %v499 = vld [vmem:[#allocation2] sm:$0x3]
        %v500 = vld [vmem:[%s5] sm:$0xff]
        %v501 = vld [vmem:[%s5 + $0x8] sm:$0xff]
        %v502 = vld [vmem:[%s7] sm:$0x1]
        %v504 = vlaneseq
        %v505 = vshrl.u32 %v504, 7
        %v506 = vsub.s32 0, %v505
        %v507 = vrot.slane %v502, %v506
        %vm509 = vcmask 130048
        %v511 = vsel %vm509, %v496, 0
        %513 = vmatprep.subr.mxu0 0.0
        %514 = vmatpush1.msra.mxu0 %v500
        %515 = vmatprep.subr.mxu0 0.0
        %516 = vmatpush1.msra.mxu0 %v501
        %517 = vmatprep.subr.mxu0 0.0
        %518 = vmatpush1.msra.mxu0 0.0
        %519 = vmatprep.subr.mxu0 0.0
        %520 = vmatpush1.msra.mxu0 0.0
        %521 = vmatprep.subr.mxu0 0.0
        %522 = vmatpush1.msra.mxu0 0.0
        %523 = vmatprep.subr.mxu0 0.0
        %524 = vmatpush1.msra.mxu0 0.0
        %525 = vmatprep.subr.mxu0 0.0
        %526 = vmatpush1.msra.mxu0 0.0
        %527 = vmatprep.subr.mxu0 0.0
        %528 = vmatpush1.msra.mxu0 0.0
        %529 = vmatprep.subr.mxu0 0.0
        %530 = vmatpush1.msra.mxu0 0.0
        %531 = vmatprep.subr.mxu0 0.0
        %532 = vmatpush1.msra.mxu0 0.0
        %533 = vmatprep.subr.mxu0 0.0
        %534 = vmatpush1.msra.mxu0 0.0
        %535 = vmatprep.subr.mxu0 0.0
        %536 = vmatpush1.msra.mxu0 0.0
        %537 = vmatprep.subr.mxu0 0.0
        %538 = vmatpush1.msra.mxu0 0.0
        %539 = vmatprep.subr.mxu0 0.0
        %540 = vmatpush1.msra.mxu0 0.0
        %541 = vmatprep.subr.mxu0 0.0
        %542 = vmatpush1.msra.mxu0 0.0
        %543 = vmatprep.subr.mxu0 0.0
        %544 = vmatpush1.msra.mxu0 0.0
        %545 = vmatprep.subr.mxu0 0.0
        %546 = vmatpush1.msra.mxu0 0.0
        %547 = vmatprep.subr.mxu0 0.0
        %548 = vmatpush1.msra.mxu0 0.0
        %549 = vmatprep.subr.mxu0 0.0
        %550 = vmatpush1.msra.mxu0 0.0
        %551 = vmatprep.subr.mxu0 0.0
        %552 = vmatpush1.msra.mxu0 0.0
        %553 = vmatprep.subr.mxu0 0.0
        %554 = vmatpush1.msra.mxu0 0.0
        %555 = vmatprep.subr.mxu0 0.0
        %556 = vmatpush1.msra.mxu0 0.0
        %557 = vmatprep.subr.mxu0 0.0
        %558 = vmatpush1.msra.mxu0 0.0
        %559 = vmatprep.subr.mxu0 0.0
        %560 = vmatpush1.msra.mxu0 0.0
        %561 = vmatprep.subr.mxu0 0.0
        %562 = vmatpush1.msra.mxu0 0.0
        %563 = vmatprep.subr.mxu0 0.0
        %564 = vmatpush1.msra.mxu0 0.0
        %565 = vmatprep.subr.mxu0 0.0
        %566 = vmatpush1.msra.mxu0 0.0
        %567 = vmatprep.subr.mxu0 0.0
        %568 = vmatpush1.msra.mxu0 0.0
        %569 = vmatprep.subr.mxu0 0.0
        %570 = vmatpush1.msra.mxu0 0.0
        %571 = vmatprep.subr.mxu0 0.0
        %572 = vmatpush1.msra.mxu0 0.0
        %573 = vmatprep.subr.mxu0 0.0
        %574 = vmatpush1.msra.mxu0 0.0
        %575 = vmatprep.subr.mxu0 0.0
        %576 = vmatpush1.msra.mxu0 0.0
        %577 = vmatprep.mubr.f32.mxu0 0.0
        %578 = vmatmul.mubr.f32.gmra.mrb[0].mxu0 %v511
        %v579 = vpop.f32.mrb[0].mxu0
        %v580 = vadd.f32 %v507, %v579
        %v581 = vpop.f32.mrb[0].mxu0
        %582 = vdwg.mxu0
        %v583 = vld [vmem:[%s6] sm:$0xff]
        %v584 = vld [vmem:[%s6 + $0x8] sm:$0xff]
        %v585 = vld [vmem:[%s6 + $0x10] sm:$0xff]
        %v586 = vld [vmem:[%s6 + $0x18] sm:$0xff]
        %v587 = vld [vmem:[%s8] sm:$0x1]
        %v589 = vlaneseq
        %v590 = vshrl.u32 %v589, 7
        %v591 = vsub.s32 0, %v590
        %v592 = vrot.slane %v587, %v591
        %v595 = vsel %vm425, %v499, 0
        %597 = vmatprep.subr.mxu0 0.0
        %598 = vmatpush1.msra.mxu0 %v583
        %599 = vmatprep.subr.mxu0 0.0
        %600 = vmatpush1.msra.mxu0 %v584
        %601 = vmatprep.subr.mxu0 0.0
        %602 = vmatpush1.msra.mxu0 %v585
        %603 = vmatprep.subr.mxu0 0.0
        %604 = vmatpush1.msra.mxu0 %v586
        %605 = vmatprep.subr.mxu0 0.0
        %606 = vmatpush1.msra.mxu0 0.0
        %607 = vmatprep.subr.mxu0 0.0
        %608 = vmatpush1.msra.mxu0 0.0
        %609 = vmatprep.subr.mxu0 0.0
        %610 = vmatpush1.msra.mxu0 0.0
        %611 = vmatprep.subr.mxu0 0.0
        %612 = vmatpush1.msra.mxu0 0.0
        %613 = vmatprep.subr.mxu0 0.0
        %614 = vmatpush1.msra.mxu0 0.0
        %615 = vmatprep.subr.mxu0 0.0
        %616 = vmatpush1.msra.mxu0 0.0
        %617 = vmatprep.subr.mxu0 0.0
        %618 = vmatpush1.msra.mxu0 0.0
        %619 = vmatprep.subr.mxu0 0.0
        %620 = vmatpush1.msra.mxu0 0.0
        %621 = vmatprep.subr.mxu0 0.0
        %622 = vmatpush1.msra.mxu0 0.0
        %623 = vmatprep.subr.mxu0 0.0
        %624 = vmatpush1.msra.mxu0 0.0
        %625 = vmatprep.subr.mxu0 0.0
        %626 = vmatpush1.msra.mxu0 0.0
        %627 = vmatprep.subr.mxu0 0.0
        %628 = vmatpush1.msra.mxu0 0.0
        %629 = vmatprep.subr.mxu0 0.0
        %630 = vmatpush1.msra.mxu0 0.0
        %631 = vmatprep.subr.mxu0 0.0
        %632 = vmatpush1.msra.mxu0 0.0
        %633 = vmatprep.subr.mxu0 0.0
        %634 = vmatpush1.msra.mxu0 0.0
        %635 = vmatprep.subr.mxu0 0.0
        %636 = vmatpush1.msra.mxu0 0.0
        %637 = vmatprep.subr.mxu0 0.0
        %638 = vmatpush1.msra.mxu0 0.0
        %639 = vmatprep.subr.mxu0 0.0
        %640 = vmatpush1.msra.mxu0 0.0
        %641 = vmatprep.subr.mxu0 0.0
        %642 = vmatpush1.msra.mxu0 0.0
        %643 = vmatprep.subr.mxu0 0.0
        %644 = vmatpush1.msra.mxu0 0.0
        %645 = vmatprep.subr.mxu0 0.0
        %646 = vmatpush1.msra.mxu0 0.0
        %647 = vmatprep.subr.mxu0 0.0
        %648 = vmatpush1.msra.mxu0 0.0
        %649 = vmatprep.subr.mxu0 0.0
        %650 = vmatpush1.msra.mxu0 0.0
        %651 = vmatprep.subr.mxu0 0.0
        %652 = vmatpush1.msra.mxu0 0.0
        %653 = vmatprep.subr.mxu0 0.0
        %654 = vmatpush1.msra.mxu0 0.0
        %655 = vmatprep.subr.mxu0 0.0
        %656 = vmatpush1.msra.mxu0 0.0
        %657 = vmatprep.subr.mxu0 0.0
        %658 = vmatpush1.msra.mxu0 0.0
        %659 = vmatprep.subr.mxu0 0.0
        %660 = vmatpush1.msra.mxu0 0.0
        %661 = vmatprep.mubr.f32.mxu0 0.0
        %662 = vmatmul.mubr.f32.gmra.mrb[0].mxu0 %v595
        %v663 = vpop.f32.mrb[0].mxu0
        %v664 = vadd.f32 %v592, %v663
        %v665 = vpop.f32.mrb[0].mxu0
        %666 = vdwg.mxu0
        %v667 = vadd.f32 %v580, %v664
        %v668 = vxor.u32 %v667, 2147483648
        %v669 = vmul.f32 %v668, 1.442695
        %v670 = vpow.pop %v669
        %v671 = vadd.f32 %v670, 1.0
        %v672 = vrcp.pop %v671
        %v673 = vmul.f32 1.0, %v672
        %675 = vrot.lane.b32.xlu0 %v664, 64
        %v676 = vpop.permute.xlu0 %675
        %v678 = vmul.f32 %v673, %v676
        %680 = vrot.lane.b32.xlu0 %v678, 64
        %v681 = vpop.permute.xlu0 %680
        %v683 = vadd.f32 %v580, %v681
        %v684 = vtanh.pop %v683
        %v685 = vsub.f32 1.0, %v673
        %687 = vrot.lane.b32.xlu0 %v684, 96
        %v688 = vpop.permute.xlu0 %687
        %v690 = vmul.f32 %v685, %v688
        %691 = vrot.lane.b32.xlu0 %v499, 32
        %v692 = vpop.permute.xlu0 %691
        %v694 = vmul.f32 %v673, %v692
        %v695 = vadd.f32 %v690, %v694
        %v696 = vld [vmem:[%s4] sm:$0xff]
        %v697 = vld [vmem:[%s4 + $0x8] sm:$0xff]
        %v698 = vld [vmem:[%s4 + $0x10] sm:$0xff]
        %v699 = vld [vmem:[%s4 + $0x18] sm:$0xff]
        %v700 = vld [vmem:[%s4 + $0x20] sm:$0xff]
        %v701 = vld [vmem:[%s4 + $0x28] sm:$0xff]
        %v702 = vld [vmem:[%s4 + $0x30] sm:$0xff]
        %v703 = vld [vmem:[%s4 + $0x38] sm:$0xff]
        %v704 = vld [vmem:[%s3] sm:$0xff]
        %v705 = vld [vmem:[%s3 + $0x8] sm:$0xff]
        %707 = vrot.lane.b32.xlu0 %v695, 96
        %v708 = vpop.permute.xlu0 %707
        %v709 = vsel %vm425, %v708, 0
        %711 = vmatprep.subr.mxu0 0.0
        %712 = vmatpush1.msra.mxu0 %v696
        %713 = vmatprep.subr.mxu0 0.0
        %714 = vmatpush1.msra.mxu0 %v697
        %715 = vmatprep.subr.mxu0 0.0
        %716 = vmatpush1.msra.mxu0 %v698
        %717 = vmatprep.subr.mxu0 0.0
        %718 = vmatpush1.msra.mxu0 %v699
        %719 = vmatprep.subr.mxu0 0.0
        %720 = vmatpush1.msra.mxu0 0.0
        %721 = vmatprep.subr.mxu0 0.0
        %722 = vmatpush1.msra.mxu0 0.0
        %723 = vmatprep.subr.mxu0 0.0
        %724 = vmatpush1.msra.mxu0 0.0
        %725 = vmatprep.subr.mxu0 0.0
        %726 = vmatpush1.msra.mxu0 0.0
        %727 = vmatprep.subr.mxu0 0.0
        %728 = vmatpush1.msra.mxu0 0.0
        %729 = vmatprep.subr.mxu0 0.0
        %730 = vmatpush1.msra.mxu0 0.0
        %731 = vmatprep.subr.mxu0 0.0
        %732 = vmatpush1.msra.mxu0 0.0
        %733 = vmatprep.subr.mxu0 0.0
        %734 = vmatpush1.msra.mxu0 0.0
        %735 = vmatprep.subr.mxu0 0.0
        %736 = vmatpush1.msra.mxu0 0.0
        %737 = vmatprep.subr.mxu0 0.0
        %738 = vmatpush1.msra.mxu0 0.0
        %739 = vmatprep.subr.mxu0 0.0
        %740 = vmatpush1.msra.mxu0 0.0
        %741 = vmatprep.subr.mxu0 0.0
        %742 = vmatpush1.msra.mxu0 0.0
        %743 = vmatprep.subr.mxu0 0.0
        %744 = vmatpush1.msra.mxu0 0.0
        %745 = vmatprep.subr.mxu0 0.0
        %746 = vmatpush1.msra.mxu0 0.0
        %747 = vmatprep.subr.mxu0 0.0
        %748 = vmatpush1.msra.mxu0 0.0
        %749 = vmatprep.subr.mxu0 0.0
        %750 = vmatpush1.msra.mxu0 0.0
        %751 = vmatprep.subr.mxu0 0.0
        %752 = vmatpush1.msra.mxu0 0.0
        %753 = vmatprep.subr.mxu0 0.0
        %754 = vmatpush1.msra.mxu0 0.0
        %755 = vmatprep.subr.mxu0 0.0
        %756 = vmatpush1.msra.mxu0 0.0
        %757 = vmatprep.subr.mxu0 0.0
        %758 = vmatpush1.msra.mxu0 0.0
        %759 = vmatprep.subr.mxu0 0.0
        %760 = vmatpush1.msra.mxu0 0.0
        %761 = vmatprep.subr.mxu0 0.0
        %762 = vmatpush1.msra.mxu0 0.0
        %763 = vmatprep.subr.mxu0 0.0
        %764 = vmatpush1.msra.mxu0 0.0
        %765 = vmatprep.subr.mxu0 0.0
        %766 = vmatpush1.msra.mxu0 0.0
        %767 = vmatprep.subr.mxu0 0.0
        %768 = vmatpush1.msra.mxu0 0.0
        %769 = vmatprep.subr.mxu0 0.0
        %770 = vmatpush1.msra.mxu0 0.0
        %771 = vmatprep.subr.mxu0 0.0
        %772 = vmatpush1.msra.mxu0 0.0
        %773 = vmatprep.subr.mxu0 0.0
        %774 = vmatpush1.msra.mxu0 0.0
        %775 = vmatprep.mubr.f32.mxu0 0.0
        %776 = vmatmul.mubr.f32.gmra.mrb[0].mxu0 %v709
        %v777 = vpop.f32.mrb[0].mxu0
        %v778 = vadd.f32 0.0, %v777
        %v779 = vpop.f32.mrb[0].mxu0
        %780 = vdwg.mxu0
        %v781 = vrot.slane %v695, 1
        %782 = vrot.lane.b32.xlu0 %v781, 96
        %v783 = vpop.permute.xlu0 %782
        %v784 = vsel %vm425, %v783, 0
        %786 = vmatprep.subr.mxu0 0.0
        %787 = vmatpush1.msra.mxu0 %v700
        %788 = vmatprep.subr.mxu0 0.0
        %789 = vmatpush1.msra.mxu0 %v701
        %790 = vmatprep.subr.mxu0 0.0
        %791 = vmatpush1.msra.mxu0 %v702
        %792 = vmatprep.subr.mxu0 0.0
        %793 = vmatpush1.msra.mxu0 %v703
        %794 = vmatprep.subr.mxu0 0.0
        %795 = vmatpush1.msra.mxu0 0.0
        %796 = vmatprep.subr.mxu0 0.0
        %797 = vmatpush1.msra.mxu0 0.0
        %798 = vmatprep.subr.mxu0 0.0
        %799 = vmatpush1.msra.mxu0 0.0
        %800 = vmatprep.subr.mxu0 0.0
        %801 = vmatpush1.msra.mxu0 0.0
        %802 = vmatprep.subr.mxu0 0.0
        %803 = vmatpush1.msra.mxu0 0.0
        %804 = vmatprep.subr.mxu0 0.0
        %805 = vmatpush1.msra.mxu0 0.0
        %806 = vmatprep.subr.mxu0 0.0
        %807 = vmatpush1.msra.mxu0 0.0
        %808 = vmatprep.subr.mxu0 0.0
        %809 = vmatpush1.msra.mxu0 0.0
        %810 = vmatprep.subr.mxu0 0.0
        %811 = vmatpush1.msra.mxu0 0.0
        %812 = vmatprep.subr.mxu0 0.0
        %813 = vmatpush1.msra.mxu0 0.0
        %814 = vmatprep.subr.mxu0 0.0
        %815 = vmatpush1.msra.mxu0 0.0
        %816 = vmatprep.subr.mxu0 0.0
        %817 = vmatpush1.msra.mxu0 0.0
        %818 = vmatprep.subr.mxu0 0.0
        %819 = vmatpush1.msra.mxu0 0.0
        %820 = vmatprep.subr.mxu0 0.0
        %821 = vmatpush1.msra.mxu0 0.0
        %822 = vmatprep.subr.mxu0 0.0
        %823 = vmatpush1.msra.mxu0 0.0
        %824 = vmatprep.subr.mxu0 0.0
        %825 = vmatpush1.msra.mxu0 0.0
        %826 = vmatprep.subr.mxu0 0.0
        %827 = vmatpush1.msra.mxu0 0.0
        %828 = vmatprep.subr.mxu0 0.0
        %829 = vmatpush1.msra.mxu0 0.0
        %830 = vmatprep.subr.mxu0 0.0
        %831 = vmatpush1.msra.mxu0 0.0
        %832 = vmatprep.subr.mxu0 0.0
        %833 = vmatpush1.msra.mxu0 0.0
        %834 = vmatprep.subr.mxu0 0.0
        %835 = vmatpush1.msra.mxu0 0.0
        %836 = vmatprep.subr.mxu0 0.0
        %837 = vmatpush1.msra.mxu0 0.0
        %838 = vmatprep.subr.mxu0 0.0
        %839 = vmatpush1.msra.mxu0 0.0
        %840 = vmatprep.subr.mxu0 0.0
        %841 = vmatpush1.msra.mxu0 0.0
        %842 = vmatprep.subr.mxu0 0.0
        %843 = vmatpush1.msra.mxu0 0.0
        %844 = vmatprep.subr.mxu0 0.0
        %845 = vmatpush1.msra.mxu0 0.0
        %846 = vmatprep.subr.mxu0 0.0
        %847 = vmatpush1.msra.mxu0 0.0
        %848 = vmatprep.subr.mxu0 0.0
        %849 = vmatpush1.msra.mxu0 0.0
        %850 = vmatprep.mubr.f32.mxu0 0.0
        %851 = vmatmul.mubr.f32.gmra.mrb[0].mxu0 %v784
        %v852 = vpop.f32.mrb[0].mxu0
        %v853 = vadd.f32 0.0, %v852
        %v854 = vpop.f32.mrb[0].mxu0
        %855 = vdwg.mxu0
        %v857 = vrot.slane %v853, 7
        %v859 = vsel %vm419, %v778, %v857
        %vm860 = vcmask 58368
        %v861 = vsel %vm860, %v859, -inf
        %862 = vmax.xlane.f32.xlu0 %v861
        %v863 = vpop.xlane.xlu0 %862
        %v864 = vsub.f32 %v859, %v863
        %v865 = vmul.f32 %v864, 1.442695
        %v866 = vpow.pop %v865
        %v867 = vsel %vm860, %v866, 0.0
        %868 = vadd.xlane.f32.xlu0 %v867
        %v869 = vpop.xlane.xlu0 %868
        %v870 = vrcp.pop %v869
        %v871 = vmul.f32 %v866, %v870
        %vm872 = vcmask 64512
        %v874 = vsel %vm872, %v871, 0
        %876 = vmatprep.subr.mxu0 0.0
        %877 = vmatpush1.msra.mxu0 %v704
        %878 = vmatprep.subr.mxu0 0.0
        %879 = vmatpush1.msra.mxu0 0.0
        %880 = vmatprep.subr.mxu0 0.0
        %881 = vmatpush1.msra.mxu0 0.0
        %882 = vmatprep.subr.mxu0 0.0
        %883 = vmatpush1.msra.mxu0 0.0
        %884 = vmatprep.subr.mxu0 0.0
        %885 = vmatpush1.msra.mxu0 0.0
        %886 = vmatprep.subr.mxu0 0.0
        %887 = vmatpush1.msra.mxu0 0.0
        %888 = vmatprep.subr.mxu0 0.0
        %889 = vmatpush1.msra.mxu0 0.0
        %890 = vmatprep.subr.mxu0 0.0
        %891 = vmatpush1.msra.mxu0 0.0
        %892 = vmatprep.subr.mxu0 0.0
        %893 = vmatpush1.msra.mxu0 0.0
        %894 = vmatprep.subr.mxu0 0.0
        %895 = vmatpush1.msra.mxu0 0.0
        %896 = vmatprep.subr.mxu0 0.0
        %897 = vmatpush1.msra.mxu0 0.0
        %898 = vmatprep.subr.mxu0 0.0
        %899 = vmatpush1.msra.mxu0 0.0
        %900 = vmatprep.subr.mxu0 0.0
        %901 = vmatpush1.msra.mxu0 0.0
        %902 = vmatprep.subr.mxu0 0.0
        %903 = vmatpush1.msra.mxu0 0.0
        %904 = vmatprep.subr.mxu0 0.0
        %905 = vmatpush1.msra.mxu0 0.0
        %906 = vmatprep.subr.mxu0 0.0
        %907 = vmatpush1.msra.mxu0 0.0
        %908 = vmatprep.subr.mxu0 0.0
        %909 = vmatpush1.msra.mxu0 0.0
        %910 = vmatprep.subr.mxu0 0.0
        %911 = vmatpush1.msra.mxu0 0.0
        %912 = vmatprep.subr.mxu0 0.0
        %913 = vmatpush1.msra.mxu0 0.0
        %914 = vmatprep.subr.mxu0 0.0
        %915 = vmatpush1.msra.mxu0 0.0
        %916 = vmatprep.subr.mxu0 0.0
        %917 = vmatpush1.msra.mxu0 0.0
        %918 = vmatprep.subr.mxu0 0.0
        %919 = vmatpush1.msra.mxu0 0.0
        %920 = vmatprep.subr.mxu0 0.0
        %921 = vmatpush1.msra.mxu0 0.0
        %922 = vmatprep.subr.mxu0 0.0
        %923 = vmatpush1.msra.mxu0 0.0
        %924 = vmatprep.subr.mxu0 0.0
        %925 = vmatpush1.msra.mxu0 0.0
        %926 = vmatprep.subr.mxu0 0.0
        %927 = vmatpush1.msra.mxu0 0.0
        %928 = vmatprep.subr.mxu0 0.0
        %929 = vmatpush1.msra.mxu0 0.0
        %930 = vmatprep.subr.mxu0 0.0
        %931 = vmatpush1.msra.mxu0 0.0
        %932 = vmatprep.subr.mxu0 0.0
        %933 = vmatpush1.msra.mxu0 0.0
        %934 = vmatprep.subr.mxu0 0.0
        %935 = vmatpush1.msra.mxu0 0.0
        %936 = vmatprep.subr.mxu0 0.0
        %937 = vmatpush1.msra.mxu0 0.0
        %938 = vmatprep.subr.mxu0 0.0
        %939 = vmatpush1.msra.mxu0 0.0
        %940 = vmatprep.mubr.f32.mxu0 0.0
        %941 = vmatmul.mubr.f32.gmra.mrb[0].mxu0 %v874
        %v942 = vpop.f32.mrb[0].mxu0
        %v943 = vadd.f32 0.0, %v942
        %v944 = vpop.f32.mrb[0].mxu0
        %945 = vdwg.mxu0
        %v946 = vrot.slane %v871, 1
        %v947 = vsel %vm872, %v946, 0
        %949 = vmatprep.subr.mxu0 0.0
        %950 = vmatpush1.msra.mxu0 %v705
        %951 = vmatprep.subr.mxu0 0.0
        %952 = vmatpush1.msra.mxu0 0.0
        %953 = vmatprep.subr.mxu0 0.0
        %954 = vmatpush1.msra.mxu0 0.0
        %955 = vmatprep.subr.mxu0 0.0
        %956 = vmatpush1.msra.mxu0 0.0
        %957 = vmatprep.subr.mxu0 0.0
        %958 = vmatpush1.msra.mxu0 0.0
        %959 = vmatprep.subr.mxu0 0.0
        %960 = vmatpush1.msra.mxu0 0.0
        %961 = vmatprep.subr.mxu0 0.0
        %962 = vmatpush1.msra.mxu0 0.0
        %963 = vmatprep.subr.mxu0 0.0
        %964 = vmatpush1.msra.mxu0 0.0
        %965 = vmatprep.subr.mxu0 0.0
        %966 = vmatpush1.msra.mxu0 0.0
        %967 = vmatprep.subr.mxu0 0.0
        %968 = vmatpush1.msra.mxu0 0.0
        %969 = vmatprep.subr.mxu0 0.0
        %970 = vmatpush1.msra.mxu0 0.0
        %971 = vmatprep.subr.mxu0 0.0
        %972 = vmatpush1.msra.mxu0 0.0
        %973 = vmatprep.subr.mxu0 0.0
        %974 = vmatpush1.msra.mxu0 0.0
        %975 = vmatprep.subr.mxu0 0.0
        %976 = vmatpush1.msra.mxu0 0.0
        %977 = vmatprep.subr.mxu0 0.0
        %978 = vmatpush1.msra.mxu0 0.0
        %979 = vmatprep.subr.mxu0 0.0
        %980 = vmatpush1.msra.mxu0 0.0
        %981 = vmatprep.subr.mxu0 0.0
        %982 = vmatpush1.msra.mxu0 0.0
        %983 = vmatprep.subr.mxu0 0.0
        %984 = vmatpush1.msra.mxu0 0.0
        %985 = vmatprep.subr.mxu0 0.0
        %986 = vmatpush1.msra.mxu0 0.0
        %987 = vmatprep.subr.mxu0 0.0
        %988 = vmatpush1.msra.mxu0 0.0
        %989 = vmatprep.subr.mxu0 0.0
        %990 = vmatpush1.msra.mxu0 0.0
        %991 = vmatprep.subr.mxu0 0.0
        %992 = vmatpush1.msra.mxu0 0.0
        %993 = vmatprep.subr.mxu0 0.0
        %994 = vmatpush1.msra.mxu0 0.0
        %995 = vmatprep.subr.mxu0 0.0
        %996 = vmatpush1.msra.mxu0 0.0
        %997 = vmatprep.subr.mxu0 0.0
        %998 = vmatpush1.msra.mxu0 0.0
        %999 = vmatprep.subr.mxu0 0.0
        %1000 = vmatpush1.msra.mxu0 0.0
        %1001 = vmatprep.subr.mxu0 0.0
        %1002 = vmatpush1.msra.mxu0 0.0
        %1003 = vmatprep.subr.mxu0 0.0
        %1004 = vmatpush1.msra.mxu0 0.0
        %1005 = vmatprep.subr.mxu0 0.0
        %1006 = vmatpush1.msra.mxu0 0.0
        %1007 = vmatprep.subr.mxu0 0.0
        %1008 = vmatpush1.msra.mxu0 0.0
        %1009 = vmatprep.subr.mxu0 0.0
        %1010 = vmatpush1.msra.mxu0 0.0
        %1011 = vmatprep.subr.mxu0 0.0
        %1012 = vmatpush1.msra.mxu0 0.0
        %1013 = vmatprep.mubr.f32.mxu0 0.0
        %1014 = vmatmul.mubr.f32.gmra.mrb[0].mxu0 %v947
        %v1015 = vpop.f32.mrb[0].mxu0
        %v1016 = vadd.f32 0.0, %v1015
        %v1017 = vpop.f32.mrb[0].mxu0
        %1018 = vdwg.mxu0
        %v1020 = vrot.slane %v1016, 7
        %v1022 = vsel %vm419, %v943, %v1020
        %1025 = vrot.lane.b32.xlu0 %v1022, 32
        %v1026 = vpop.permute.xlu0 %1025
        %v1028 = vsel %vm425, %v708, %v1026
        %v1029 = vld [vmem:[%s9] sm:$0xff]
        %v1030 = vld [vmem:[%s9 + $0x8] sm:$0xff]
        %v1031 = vld [vmem:[%s9 + $0x10] sm:$0xff]
        %v1032 = vld [vmem:[%s9 + $0x18] sm:$0xff]
        %v1033 = vld [vmem:[%s9 + $0x20] sm:$0xff]
        %v1034 = vld [vmem:[%s9 + $0x28] sm:$0xff]
        %v1035 = vld [vmem:[%s9 + $0x30] sm:$0xff]
        %v1036 = vld [vmem:[%s9 + $0x38] sm:$0xff]
        %vm1037 = vcmask 523264
        %v1039 = vsel %vm1037, %v1028, 0
        %1041 = vmatprep.subr.mxu0 0.0
        %1042 = vmatpush1.msra.mxu0 %v1029
        %1043 = vmatprep.subr.mxu0 0.0
        %1044 = vmatpush1.msra.mxu0 %v1030
        %1045 = vmatprep.subr.mxu0 0.0
        %1046 = vmatpush1.msra.mxu0 %v1031
        %1047 = vmatprep.subr.mxu0 0.0
        %1048 = vmatpush1.msra.mxu0 %v1032
        %1049 = vmatprep.subr.mxu0 0.0
        %1050 = vmatpush1.msra.mxu0 %v1033
        %1051 = vmatprep.subr.mxu0 0.0
        %1052 = vmatpush1.msra.mxu0 %v1034
        %1053 = vmatprep.subr.mxu0 0.0
        %1054 = vmatpush1.msra.mxu0 %v1035
        %1055 = vmatprep.subr.mxu0 0.0
        %1056 = vmatpush1.msra.mxu0 %v1036
        %1057 = vmatprep.subr.mxu0 0.0
        %1058 = vmatpush1.msra.mxu0 0.0
        %1059 = vmatprep.subr.mxu0 0.0
        %1060 = vmatpush1.msra.mxu0 0.0
        %1061 = vmatprep.subr.mxu0 0.0
        %1062 = vmatpush1.msra.mxu0 0.0
        %1063 = vmatprep.subr.mxu0 0.0
        %1064 = vmatpush1.msra.mxu0 0.0
        %1065 = vmatprep.subr.mxu0 0.0
        %1066 = vmatpush1.msra.mxu0 0.0
        %1067 = vmatprep.subr.mxu0 0.0
        %1068 = vmatpush1.msra.mxu0 0.0
        %1069 = vmatprep.subr.mxu0 0.0
        %1070 = vmatpush1.msra.mxu0 0.0
        %1071 = vmatprep.subr.mxu0 0.0
        %1072 = vmatpush1.msra.mxu0 0.0
        %1073 = vmatprep.subr.mxu0 0.0
        %1074 = vmatpush1.msra.mxu0 0.0
        %1075 = vmatprep.subr.mxu0 0.0
        %1076 = vmatpush1.msra.mxu0 0.0
        %1077 = vmatprep.subr.mxu0 0.0
        %1078 = vmatpush1.msra.mxu0 0.0
        %1079 = vmatprep.subr.mxu0 0.0
        %1080 = vmatpush1.msra.mxu0 0.0
        %1081 = vmatprep.subr.mxu0 0.0
        %1082 = vmatpush1.msra.mxu0 0.0
        %1083 = vmatprep.subr.mxu0 0.0
        %1084 = vmatpush1.msra.mxu0 0.0
        %1085 = vmatprep.subr.mxu0 0.0
        %1086 = vmatpush1.msra.mxu0 0.0
        %1087 = vmatprep.subr.mxu0 0.0
        %1088 = vmatpush1.msra.mxu0 0.0
        %1089 = vmatprep.subr.mxu0 0.0
        %1090 = vmatpush1.msra.mxu0 0.0
        %1091 = vmatprep.subr.mxu0 0.0
        %1092 = vmatpush1.msra.mxu0 0.0
        %1093 = vmatprep.subr.mxu0 0.0
        %1094 = vmatpush1.msra.mxu0 0.0
        %1095 = vmatprep.subr.mxu0 0.0
        %1096 = vmatpush1.msra.mxu0 0.0
        %1097 = vmatprep.subr.mxu0 0.0
        %1098 = vmatpush1.msra.mxu0 0.0
        %1099 = vmatprep.subr.mxu0 0.0
        %1100 = vmatpush1.msra.mxu0 0.0
        %1101 = vmatprep.subr.mxu0 0.0
        %1102 = vmatpush1.msra.mxu0 0.0
        %1103 = vmatprep.subr.mxu0 0.0
        %1104 = vmatpush1.msra.mxu0 0.0
        %1105 = vmatprep.mubr.f32.mxu0 0.0
        %1106 = vmatmul.mubr.f32.gmra.mrb[0].mxu0 %v1039
        %v1107 = vpop.f32.mrb[0].mxu0
        %v1108 = vadd.f32 0.0, %v1107
        %v1109 = vpop.f32.mrb[0].mxu0
        %1110 = vdwg.mxu0
        %v1111 = vtanh.pop %v1108
        %v1112 = vld [vmem:[%s10] sm:$0xff]
        %v1113 = vld [vmem:[%s10 + $0x8] sm:$0xff]
        %v1114 = vld [vmem:[%s10 + $0x10] sm:$0xff]
        %v1115 = vld [vmem:[%s10 + $0x18] sm:$0xff]
        %v1116 = vld [vmem:[%s11] sm:$0x1]
        %v1118 = vlaneseq
        %v1119 = vshrl.u32 %v1118, 7
        %v1120 = vsub.s32 0, %v1119
        %v1121 = vrot.slane %v1116, %v1120
        %v1124 = vsel %vm425, %v1111, 0
        %1126 = vmatprep.subr.mxu0 0.0
        %1127 = vmatpush1.msra.mxu0 %v1112
        %1128 = vmatprep.subr.mxu0 0.0
        %1129 = vmatpush1.msra.mxu0 %v1113
        %1130 = vmatprep.subr.mxu0 0.0
        %1131 = vmatpush1.msra.mxu0 %v1114
        %1132 = vmatprep.subr.mxu0 0.0
        %1133 = vmatpush1.msra.mxu0 %v1115
        %1134 = vmatprep.subr.mxu0 0.0
        %1135 = vmatpush1.msra.mxu0 0.0
        %1136 = vmatprep.subr.mxu0 0.0
        %1137 = vmatpush1.msra.mxu0 0.0
        %1138 = vmatprep.subr.mxu0 0.0
        %1139 = vmatpush1.msra.mxu0 0.0
        %1140 = vmatprep.subr.mxu0 0.0
        %1141 = vmatpush1.msra.mxu0 0.0
        %1142 = vmatprep.subr.mxu0 0.0
        %1143 = vmatpush1.msra.mxu0 0.0
        %1144 = vmatprep.subr.mxu0 0.0
        %1145 = vmatpush1.msra.mxu0 0.0
        %1146 = vmatprep.subr.mxu0 0.0
        %1147 = vmatpush1.msra.mxu0 0.0
        %1148 = vmatprep.subr.mxu0 0.0
        %1149 = vmatpush1.msra.mxu0 0.0
        %1150 = vmatprep.subr.mxu0 0.0
        %1151 = vmatpush1.msra.mxu0 0.0
        %1152 = vmatprep.subr.mxu0 0.0
        %1153 = vmatpush1.msra.mxu0 0.0
        %1154 = vmatprep.subr.mxu0 0.0
        %1155 = vmatpush1.msra.mxu0 0.0
        %1156 = vmatprep.subr.mxu0 0.0
        %1157 = vmatpush1.msra.mxu0 0.0
        %1158 = vmatprep.subr.mxu0 0.0
        %1159 = vmatpush1.msra.mxu0 0.0
        %1160 = vmatprep.subr.mxu0 0.0
        %1161 = vmatpush1.msra.mxu0 0.0
        %1162 = vmatprep.subr.mxu0 0.0
        %1163 = vmatpush1.msra.mxu0 0.0
        %1164 = vmatprep.subr.mxu0 0.0
        %1165 = vmatpush1.msra.mxu0 0.0
        %1166 = vmatprep.subr.mxu0 0.0
        %1167 = vmatpush1.msra.mxu0 0.0
        %1168 = vmatprep.subr.mxu0 0.0
        %1169 = vmatpush1.msra.mxu0 0.0
        %1170 = vmatprep.subr.mxu0 0.0
        %1171 = vmatpush1.msra.mxu0 0.0
        %1172 = vmatprep.subr.mxu0 0.0
        %1173 = vmatpush1.msra.mxu0 0.0
        %1174 = vmatprep.subr.mxu0 0.0
        %1175 = vmatpush1.msra.mxu0 0.0
        %1176 = vmatprep.subr.mxu0 0.0
        %1177 = vmatpush1.msra.mxu0 0.0
        %1178 = vmatprep.subr.mxu0 0.0
        %1179 = vmatpush1.msra.mxu0 0.0
        %1180 = vmatprep.subr.mxu0 0.0
        %1181 = vmatpush1.msra.mxu0 0.0
        %1182 = vmatprep.subr.mxu0 0.0
        %1183 = vmatpush1.msra.mxu0 0.0
        %1184 = vmatprep.subr.mxu0 0.0
        %1185 = vmatpush1.msra.mxu0 0.0
        %1186 = vmatprep.subr.mxu0 0.0
        %1187 = vmatpush1.msra.mxu0 0.0
        %1188 = vmatprep.subr.mxu0 0.0
        %1189 = vmatpush1.msra.mxu0 0.0
        %1190 = vmatprep.mubr.f32.mxu0 0.0
        %1191 = vmatmul.mubr.f32.gmra.mrb[0].mxu0 %v1124
        %v1192 = vpop.f32.mrb[0].mxu0
        %v1193 = vadd.f32 %v1121, %v1192
        %v1194 = vpop.f32.mrb[0].mxu0
        %1195 = vdwg.mxu0
        %vm1196 = vcmask 254976
        %v1197 = vsel %vm1196, %v1193, -inf
        %1198 = vmax.xlane.f32.xlu0 %v1197
        %v1199 = vpop.xlane.xlu0 %1198
        %v1200 = vsub.f32 %v1193, %v1199
        %v1201 = vmul.f32 %v1200, 1.442695
        %v1202 = vpow.pop %v1201
        %v1203 = vsel %vm1196, %v1202, 0.0
        %1204 = vadd.xlane.f32.xlu0 %v1203
        %v1205 = vpop.xlane.xlu0 %1204
        %v1206 = vlog2.pop %v1205
        %v1207 = vmul.f32 %v1206, 0.6931472
        %v1208 = vsub.f32 %v1200, %v1207
        %1209 = vst.msk [vmem:[%s395] sm:$0x3] %vm1196, %v1208
        %1210 = vst.msk [vmem:[#allocation2] sm:$0x3] %vm1196, %v708
        %p1211 = scmp.eq.s32.totalorder %s35, 8
        // Predicated region
        $region69: #{decoder_forward.1} parent=63 // pred_check
          %p1212 = pneg %p1211
        $region70: #{decoder_forward.1} parent=63 // pred_check_branch
          %1214 = sbr.rel (%p1212) target = $region72
        $region71: #{decoder_forward.1} parent=63 // pred_region
          %1215 = vst.msk [vmem:[#allocation7] sm:$0x3] %vm1196, %v708
        $region72: #{decoder_forward.1} parent=63 // pred_fallthru
          _
        %s1216 = sand.u32 %s274, 1
        %s1217 = scalar_lea.sflag [#allocation6], %s1216
        %s1218 = sand.u32 %s274, 1
        %s1219 = smul.addr %s1218, 2
        %s1220 = scalar_lea.vmem [#allocation5], %s1219
        // Predicated region
        $region73: #{decoder_forward.1} parent=63 // pred_check
          %p1221 = pneg %p284
        $region74: #{decoder_forward.1} parent=63 // pred_check_branch
          %1223 = sbr.rel (%p1221) target = $region76
        $region75: #{decoder_forward.1} parent=63 // pred_region
          %s1225 = ssub.s32 32, 32
          %1226 = vsyncadd %s1217, %s1225
          %s1227 = smul.addr %s35, 32
          %s1228 = scalar_lea.hbm %s12, %s1227
          %s1230 = sshll.u32 %s1220, 4
          %s1231 = int_to_ptr.vmem [resolvable:$true] %s1230
          %1233 = dma.vmem_to_hbm [thread:$0]  %s1231, 32, %s1228, %s1217
        $region76: #{decoder_forward.1} parent=63 // pred_fallthru
          _
        // Predicated region
        $region77: #{decoder_forward.1} parent=63 // pred_check
          %p1234 = pneg %p305
        $region78: #{decoder_forward.1} parent=63 // pred_check_branch
          %1236 = sbr.rel (%p1234) target = $region80
        $region79: #{decoder_forward.1} parent=63 // pred_region
          %s1238 = ssub.s32 32, 32
          %1239 = vsyncadd [#allocation8], %s1238
          %s1241 = sshll.u32 [#allocation7], 4
          %s1242 = int_to_ptr.vmem [resolvable:$true] %s1241
          %1244 = dma.vmem_to_hbm [thread:$0]  %s1242, 32, %s13, [#allocation8]
        $region80: #{decoder_forward.1} parent=63 // pred_fallthru
          _
        // Predicated region
        $region81: #{decoder_forward.1} parent=63 // pred_check
          %p1245 = pneg %p305
        $region82: #{decoder_forward.1} parent=63 // pred_check_branch
          %1247 = sbr.rel (%p1245) target = $region84
        $region83: #{decoder_forward.1} parent=63 // pred_region
          %1248 = dma.done [#allocation8], 32
        $region84: #{decoder_forward.1} parent=63 // pred_fallthru
          _
      $region64: #{decoder_forward.1} parent=5 // pred_fallthru
        _
      %p1249 = scmp.le.s32.totalorder 2, %s30
      // Predicated region
      $region85: #{decoder_forward.1} parent=5 // pred_check
        %p1250 = pneg %p1249
      $region86: #{decoder_forward.1} parent=5 // pred_check_branch
        %1252 = sbr.rel (%p1250) target = $region88
      $region87: #{decoder_forward.1} parent=5 // pred_region
        %s1253 = ssub.s32 %s30, 2
        // Predicated region
        $region89: #{decoder_forward.1} parent=87 // pred_check
          %p1254 = pneg %p290
        $region90: #{decoder_forward.1} parent=87 // pred_check_branch
          %1256 = sbr.rel (%p1254) target = $region92
        $region91: #{decoder_forward.1} parent=87 // pred_region
          %s1257 = sand.u32 %s275, 1
          %s1258 = scalar_lea.sflag [#allocation6], %s1257
          %s1259 = sand.u32 %s275, 1
          %s1260 = smul.addr %s1259, 2
          %s1261 = scalar_lea.vmem [#allocation5], %s1260
          %1262 = dma.done %s1258, 32
        $region92: #{decoder_forward.1} parent=87 // pred_fallthru
          _
      $region88: #{decoder_forward.1} parent=5 // pred_fallthru
        _
    $region6: #{decoder_forward.1} parent=1 // loop_footer
      %s34 = sadd.s32 1, %s30
    $region7: #{decoder_forward.1} parent=1 // loop_footer_branch
      %29 = sbr.rel target = $region3
    $region8: #{decoder_forward.1} parent=1 // loop_exit
      _
    %1263 = vsyncpa [#allocation6], 1
    %s1264 = scalar_lea.sflag [#allocation6], 1
    %1265 = vsyncpa %s1264, 1
    %1266 = vsyncpa [#allocation8], 1

</llo_original>
